<compile_context>
chip_gen: v5e
topology: v5e:2x2
jax: 0.10.0
libtpu: 0.0.40
codegen_flags: <defaults>
</compile_context>

<pallas_src>
import functools
import math

import jax
import jax.numpy as jnp
from jax.experimental import pallas as pl
from jax.experimental.pallas import tpu as pltpu


# --------------------------------------------------------------------------
# Per-generation VMEM budget (detected at import, safe fallback).
#   v7x: 64 MiB physical/core -> ~48 MiB scoped; v5e/v6e: 128 MiB -> ~96 MiB.
# --------------------------------------------------------------------------
try:
    _PHYS_VMEM = int(pltpu.get_tpu_info().vmem_capacity_bytes)
except Exception:                                    # conservative default
    _PHYS_VMEM = 64 * 1024 * 1024
_VMEM_LIMIT = max(32 * 1024 * 1024, min((_PHYS_VMEM * 3) // 4, 96 * 1024 * 1024))

HEAD_PAD = 128     # merged task-head width, padded lane-dense
_EPS = 1e-5


# --------------------------------------------------------------------------
# Small helpers
# --------------------------------------------------------------------------

def _const_spec(shape, grid_rank):
    """BlockSpec for a parameter that is identical for every grid step.

    Single-buffered (constant index_map => double-buffering only wastes VMEM).
    Falls back to the default spec if this jax build lacks pipeline_mode.
    """
    n = len(shape)
    if grid_rank == 1:
        index_map = lambda i: (0,) * n
    else:
        index_map = lambda i, j: (0,) * n
    try:
        return pl.BlockSpec(shape, index_map, pipeline_mode=pl.Buffered(1))
    except (AttributeError, TypeError):
        return pl.BlockSpec(shape, index_map)


def _row_block(m):
    """Row tile for row-tiled kernels; prefer big tiles (HBM roofline)."""
    for bm in (512, 256, 128):
        if m % bm == 0:
            return bm
    return m


def _q_block(sq):
    """Query tile for the attention kernel (bounds (nh, tq, Sk) temporaries)."""
    for bq in (256, 128):
        if sq % bq == 0:
            return bq
    return sq


def _ln(x, g, b, eps):
    """LayerNorm over the last axis, all in float32."""
    mu = jnp.mean(x, axis=-1, keepdims=True)
    xc = x - mu
    var = jnp.mean(xc * xc, axis=-1, keepdims=True)
    return xc * jax.lax.rsqrt(var + eps) * g + b


# --------------------------------------------------------------------------
# Attention + residual + LN1 kernel   (grid = (batch, q-tiles))
# --------------------------------------------------------------------------

def _attn_ln1_kernel(q_ref, kv_ref, pad_ref, ing_ref, inb_ref,
                     wq_ref, bq_ref, wkv_ref, bkv_ref, wo_ref, bo_ref,
                     g1_ref, b1_ref, o_ref, *, num_heads, eps, input_ln):
    q = q_ref[0].astype(jnp.float32)            # (tq, H)
    kv = kv_ref[0].astype(jnp.float32)          # (Sk, H)
    pad = pad_ref[0]                            # (1, Sk)   1.0 == padded key
    if input_ln:                                # fused embedding LayerNorm
        q = _ln(q, ing_ref[...], inb_ref[...], eps)
        kv = _ln(kv, ing_ref[...], inb_ref[...], eps)

    H = q.shape[1]
    dh = H // num_heads
    scale = 1.0 / math.sqrt(dh)

    # Full-width projections: N=H / 2H keeps the MXU columns saturated.
    qh = jnp.dot(q.astype(jnp.bfloat16), wq_ref[...],
                 preferred_element_type=jnp.float32) + bq_ref[...]     # (tq, H)
    kvh = jnp.dot(kv.astype(jnp.bfloat16), wkv_ref[...],
                  preferred_element_type=jnp.float32) + bkv_ref[...]   # (Sk, 2H)

    neg = pad * 1e9                                                    # (1, Sk)
    ctx_parts = []
    for h in range(num_heads):                 # static unroll; all dots are 2-D
        lo = h * dh
        qs = qh[:, lo:lo + dh].astype(jnp.bfloat16)          # (tq, dh)
        ks = kvh[:, lo:lo + dh].astype(jnp.bfloat16)         # (Sk, dh)
        vs = kvh[:, H + lo:H + lo + dh].astype(jnp.bfloat16)  # (Sk, dh)

        s = jax.lax.dot_general(qs, ks, (((1,), (1,)), ((), ())),
                                preferred_element_type=jnp.float32) * scale
        s = s - neg
        s = s - jnp.max(s, axis=-1, keepdims=True)
        e = jnp.exp(s)
        probs = e * pl.reciprocal(jnp.sum(e, axis=-1, keepdims=True), approx=True)
        ctx_parts.append(jnp.dot(probs.astype(jnp.bfloat16), vs,
                                 preferred_element_type=jnp.float32))   # (tq, dh)

    # Merged output projection: head reduction rides the MXU K dimension.
    ctx = jnp.concatenate(ctx_parts, axis=-1) if num_heads > 1 else ctx_parts[0]
    attn = jnp.dot(ctx.astype(jnp.bfloat16), wo_ref[...],
                   preferred_element_type=jnp.float32) + bo_ref[...]

    o_ref[0] = _ln(q + attn, g1_ref[...], b1_ref[...], eps).astype(o_ref.dtype)


def attn_ln1(blk, q, kv, key_pad, *, input_ln=False, in_ln_g=None, in_ln_b=None):
    """q: (B,Sq,H), kv: (B,Sk,H), key_pad: (B,1,Sk) -> (B,Sq,H) (post attn+LN1)."""
    B, Sq, H = q.shape
    Sk = kv.shape[1]
    tq = _q_block(Sq)
    nqt = Sq // tq
    if in_ln_g is None:
        in_ln_g = jnp.ones((1, H), jnp.float32)
        in_ln_b = jnp.zeros((1, H), jnp.float32)

    return pl.pallas_call(
        functools.partial(_attn_ln1_kernel, num_heads=blk['num_heads'],
                          eps=_EPS, input_ln=input_ln),
        out_shape=jax.ShapeDtypeStruct((B, Sq, H), jnp.float32),
        grid=(B, nqt),
        in_specs=[
            pl.BlockSpec((1, tq, H), lambda b, t: (b, t, 0)),
            pl.BlockSpec((1, Sk, H), lambda b, t: (b, 0, 0)),
            pl.BlockSpec((1, 1, Sk), lambda b, t: (b, 0, 0)),
            _const_spec((1, H), 2), _const_spec((1, H), 2),        # input LN
            _const_spec((H, H), 2), _const_spec((1, H), 2),        # wq, bq
            _const_spec((H, 2 * H), 2), _const_spec((1, 2 * H), 2),  # wkv, bkv
            _const_spec((H, H), 2), _const_spec((1, H), 2),        # wo, bo
            _const_spec((1, H), 2), _const_spec((1, H), 2),        # ln1
        ],
        out_specs=pl.BlockSpec((1, tq, H), lambda b, t: (b, t, 0)),
        compiler_params=pltpu.CompilerParams(
            dimension_semantics=("parallel", "parallel"),
            vmem_limit_bytes=_VMEM_LIMIT),
    )(q, kv, key_pad, in_ln_g, in_ln_b,
      blk['wq'], blk['bq'], blk['wkv'], blk['bkv'], blk['wo'], blk['bo'],
      blk['ln1_g'], blk['ln1_b'])


# --------------------------------------------------------------------------
# FFN + residual + LN2 kernel (row-tiled), optional fused task-head projection
# --------------------------------------------------------------------------

def _ffn_ln2_kernel(x_ref, w1_ref, b1_ref, w2_ref, b2_ref, g_ref, beta_ref,
                    *rest, eps, with_heads):
    if with_heads:
        hw_ref, hb_ref, y_ref, head_ref = rest
    else:
        (y_ref,) = rest

    x = x_ref[...].astype(jnp.float32)                                  # (m, H)
    h = jnp.dot(x.astype(jnp.bfloat16), w1_ref[...],
                preferred_element_type=jnp.float32) + b1_ref[...]
    h = jnp.maximum(h, 0.0)
    h = jnp.dot(h.astype(jnp.bfloat16), w2_ref[...],
                preferred_element_type=jnp.float32) + b2_ref[...]
    y = _ln(x + h, g_ref[...], beta_ref[...], eps)
    y_ref[...] = y.astype(y_ref.dtype)

    if with_heads:
        # Merged lane-dense task heads, computed from the in-register LN2
        # output (enhanced_atoms is never re-read from HBM).
        head_ref[...] = (jnp.dot(y.astype(jnp.bfloat16), hw_ref[...],
                                 preferred_element_type=jnp.float32)
                         + hb_ref[...]).astype(head_ref.dtype)


def ffn_ln2(blk, x, heads_w=None, heads_b=None):
    """x: (M,H) -> (M,H)  or  ((M,H), (M,HEAD_PAD)) when heads are fused."""
    M, H = x.shape
    F = blk['ffn_w1'].shape[1]
    bm = _row_block(M)
    with_heads = heads_w is not None

    in_specs = [
        pl.BlockSpec((bm, H), lambda i: (i, 0)),
        _const_spec((H, F), 1), _const_spec((1, F), 1),
        _const_spec((F, H), 1), _const_spec((1, H), 1),
        _const_spec((1, H), 1), _const_spec((1, H), 1),
    ]
    args = [x, blk['ffn_w1'], blk['ffn_b1'], blk['ffn_w2'], blk['ffn_b2'],
            blk['ln2_g'], blk['ln2_b']]
    if with_heads:
        in_specs += [_const_spec((H, HEAD_PAD), 1), _const_spec((1, HEAD_PAD), 1)]
        args += [heads_w, heads_b]
        out_shape = (jax.ShapeDtypeStruct((M, H), jnp.float32),
                     jax.ShapeDtypeStruct((M, HEAD_PAD), jnp.float32))
        out_specs = (pl.BlockSpec((bm, H), lambda i: (i, 0)),
                     pl.BlockSpec((bm, HEAD_PAD), lambda i: (i, 0)))
    else:
        out_shape = jax.ShapeDtypeStruct((M, H), jnp.float32)
        out_specs = pl.BlockSpec((bm, H), lambda i: (i, 0))

    return pl.pallas_call(
        functools.partial(_ffn_ln2_kernel, eps=_EPS, with_heads=with_heads),
        out_shape=out_shape,
        grid=(M // bm,),
        in_specs=in_specs,
        out_specs=out_specs,
        compiler_params=pltpu.CompilerParams(
            dimension_semantics=("parallel",),
            vmem_limit_bytes=_VMEM_LIMIT),
    )(*args)


# --------------------------------------------------------------------------
# Fused atom encoder (row-tiled over B*A)
# --------------------------------------------------------------------------

def _atom_encoder_kernel(coords_ref, nmr_ref, atom_feat_ref, mask_ref,
                         pos_w_ref, pos_b_ref,
                         nmr_w1_ref, nmr_b1_ref, nmr_w2_ref, nmr_b2_ref,
                         fw_pos_ref, fw_nmr_ref, fw_atom_ref, fb_ref,
                         ln_g_ref, ln_b_ref, o_ref, *, eps):
    coords = coords_ref[...].astype(jnp.float32)      # (m, 3)
    nmr_in = nmr_ref[...].astype(jnp.float32)         # (m, 2)
    atom_feat = atom_feat_ref[...]                    # (m, H)
    am = mask_ref[...]                                # (m, 1)

    # PositionalEncoding3D: K=3 contraction as 3 broadcast-FMAs (VPU), not MXU.
    pos = (coords[:, 0:1] * pos_w_ref[0:1, :]
           + coords[:, 1:2] * pos_w_ref[1:2, :]
           + coords[:, 2:3] * pos_w_ref[2:3, :]
           + pos_b_ref[...])
    pos = jnp.maximum(pos, 0.0) * am

    # NMREncoder: Linear(2->H) relu (K=2 as FMAs), then Linear(H->H) on the MXU.
    nmr = (nmr_in[:, 0:1] * nmr_w1_ref[0:1, :]
           + nmr_in[:, 1:2] * nmr_w1_ref[1:2, :]
           + nmr_b1_ref[...])
    nmr = jnp.maximum(nmr, 0.0)
    nmr = jnp.dot(nmr.astype(jnp.bfloat16), nmr_w2_ref[...],
                  preferred_element_type=jnp.float32) + nmr_b2_ref[...]

    # FeatureFusion: concat(3H) @ W  ==  sum of three (H,H) sub-matmuls
    fused = (jnp.dot(pos.astype(jnp.bfloat16), fw_pos_ref[...],
                     preferred_element_type=jnp.float32)
             + jnp.dot(nmr.astype(jnp.bfloat16), fw_nmr_ref[...],
                       preferred_element_type=jnp.float32)
             + jnp.dot(atom_feat.astype(jnp.bfloat16), fw_atom_ref[...],
                       preferred_element_type=jnp.float32)
             + fb_ref[...])
    fused = _ln(fused, ln_g_ref[...], ln_b_ref[...], eps)
    o_ref[...] = (fused * am).astype(o_ref.dtype)


def atom_encoder(p, coords, nmr_in, atom_feat, atom_mask):
    """coords: (M,3), nmr_in: (M,2), atom_feat: (M,H), atom_mask: (M,1)."""
    M, H = atom_feat.shape
    bm = _row_block(M)
    return pl.pallas_call(
        functools.partial(_atom_encoder_kernel, eps=_EPS),
        out_shape=jax.ShapeDtypeStruct((M, H), jnp.float32),
        grid=(M // bm,),
        in_specs=[
            pl.BlockSpec((bm, 3), lambda i: (i, 0)),
            pl.BlockSpec((bm, 2), lambda i: (i, 0)),
            pl.BlockSpec((bm, H), lambda i: (i, 0)),
            pl.BlockSpec((bm, 1), lambda i: (i, 0)),
            _const_spec((3, H), 1), _const_spec((1, H), 1),
            _const_spec((2, H), 1), _const_spec((1, H), 1),
            _const_spec((H, H), 1), _const_spec((1, H), 1),
            _const_spec((H, H), 1), _const_spec((H, H), 1),
            _const_spec((H, H), 1), _const_spec((1, H), 1),
            _const_spec((1, H), 1), _const_spec((1, H), 1),
        ],
        out_specs=pl.BlockSpec((bm, H), lambda i: (i, 0)),
        compiler_params=pltpu.CompilerParams(
            dimension_semantics=("parallel",),
            vmem_limit_bytes=_VMEM_LIMIT),
    )(coords, nmr_in, atom_feat, atom_mask,
      p['pos_w'], p['pos_b'],
      p['nmr_w1'], p['nmr_b1'], p['nmr_w2'], p['nmr_b2'],
      p['fuse_w_pos'], p['fuse_w_nmr'], p['fuse_w_atom'], p['fuse_b'],
      p['fuse_ln_g'], p['fuse_ln_b'])


# --------------------------------------------------------------------------
# Parameter init (deterministic, xavier_normal gain=0.1 like the module)
# --------------------------------------------------------------------------

class KeyGen:
    def __init__(self, seed):
        self.key = jax.random.PRNGKey(seed)

    def __call__(self):
        self.key, sub = jax.random.split(self.key)
        return sub


def xavier(kg, fan_in, fan_out, gain=0.1):
    std = gain * math.sqrt(2.0 / (fan_in + fan_out))
    return std * jax.random.normal(kg(), (fan_in, fan_out), jnp.float32)


def zeros_bias(n):
    return jnp.zeros((1, n), jnp.float32)


def make_attn_block(kg, H, ffn_dim, num_heads):
    wq, wk, wv, wo = (xavier(kg, H, H) for _ in range(4))
    return dict(
        num_heads=num_heads,
        wq=wq.astype(jnp.bfloat16), bq=zeros_bias(H),
        wkv=jnp.concatenate([wk, wv], axis=1).astype(jnp.bfloat16),
        bkv=zeros_bias(2 * H),
        wo=wo.astype(jnp.bfloat16), bo=zeros_bias(H),
        ln1_g=jnp.ones((1, H), jnp.float32), ln1_b=jnp.zeros((1, H), jnp.float32),
        ffn_w1=xavier(kg, H, ffn_dim).astype(jnp.bfloat16), ffn_b1=zeros_bias(ffn_dim),
        ffn_w2=xavier(kg, ffn_dim, H).astype(jnp.bfloat16), ffn_b2=zeros_bias(H),
        ln2_g=jnp.ones((1, H), jnp.float32), ln2_b=jnp.zeros((1, H), jnp.float32),
    )


def init_params(seed, vocab, max_seq, H, num_atom_types, ffn_dim, num_heads):
    assert H % num_heads == 0
    kg = KeyGen(seed)
    p = {}
    # Synthetic ChemBERTa backbone (token emb + pos emb + emb-LN + 1 block)
    p['tok_emb'] = 0.02 * jax.random.normal(kg(), (vocab, H), jnp.float32)
    p['pos_emb'] = 0.02 * jax.random.normal(kg(), (max_seq, H), jnp.float32)
    p['emb_ln_g'] = jnp.ones((1, H), jnp.float32)
    p['emb_ln_b'] = jnp.zeros((1, H), jnp.float32)
    p['chemberta_layer'] = make_attn_block(kg, H, ffn_dim, num_heads)

    # PositionalEncoding3D (coords (.,3) -> hidden)
    p['pos_w'] = xavier(kg, 3, H); p['pos_b'] = zeros_bias(H)
    # NMREncoder (h/c shifts -> hidden)
    p['nmr_w1'] = xavier(kg, 2, H); p['nmr_b1'] = zeros_bias(H)
    p['nmr_w2'] = xavier(kg, H, H).astype(jnp.bfloat16); p['nmr_b2'] = zeros_bias(H)
    # AtomFeatureEncoder
    p['atom_emb'] = 0.02 * jax.random.normal(kg(), (num_atom_types, H), jnp.float32)
    # FeatureFusion (3H -> H) split into three H->H blocks + LayerNorm
    fuse_w = xavier(kg, 3 * H, H)
    p['fuse_w_pos'] = fuse_w[:H].astype(jnp.bfloat16)
    p['fuse_w_nmr'] = fuse_w[H:2 * H].astype(jnp.bfloat16)
    p['fuse_w_atom'] = fuse_w[2 * H:].astype(jnp.bfloat16)
    p['fuse_b'] = zeros_bias(H)
    p['fuse_ln_g'] = jnp.ones((1, H), jnp.float32)
    p['fuse_ln_b'] = jnp.zeros((1, H), jnp.float32)

    # CrossAttention layers
    p['smiles_to_atoms'] = make_attn_block(kg, H, ffn_dim, num_heads)
    p['atoms_to_smiles'] = make_attn_block(kg, H, ffn_dim, num_heads)

    # TaskHeads: merge the 4 projections (widths 10/3/1/1) into one lane-dense
    # (H, 128) weight so the output store is unmasked and fused into the last
    # FFN kernel.
    head_type_w = xavier(kg, H, num_atom_types)
    head_coord_w = xavier(kg, H, 3)
    head_h_w = xavier(kg, H, 1)
    head_c_w = xavier(kg, H, 1)
    w_heads = jnp.concatenate([head_type_w, head_coord_w, head_h_w, head_c_w], axis=1)
    total = w_heads.shape[1]
    p['heads_w'] = jnp.pad(w_heads, ((0, 0), (0, HEAD_PAD - total))).astype(jnp.bfloat16)
    p['heads_b'] = jnp.zeros((1, HEAD_PAD), jnp.float32)
    p['num_atom_types'] = num_atom_types
    return p


# --------------------------------------------------------------------------
# Model forward (dropout layers are inference-mode identities)
# --------------------------------------------------------------------------

def nmr_chemberta_forward(p, input_ids, attention_mask, coords, atom_types,
                          atom_mask, nmr_features):
    B, S = input_ids.shape
    A = atom_types.shape[1]
    H = p['tok_emb'].shape[1]

    # ---------------- _encode_smiles (synthetic ChemBERTa) ----------------
    x = p['tok_emb'][input_ids] + p['pos_emb'][:S][None, :, :]
    smiles_pad = (1.0 - attention_mask.astype(jnp.float32)).reshape(B, 1, S)
    blk = p['chemberta_layer']
    h1 = attn_ln1(blk, x, x, smiles_pad, input_ln=True,
                  in_ln_g=p['emb_ln_g'], in_ln_b=p['emb_ln_b'])
    smiles_emb = ffn_ln2(blk, h1.reshape(B * S, H)).reshape(B, S, H)

    # ---------------- _encode_atoms (single fused, row-tiled kernel) ------
    am = atom_mask.astype(jnp.float32)
    h_in = nmr_features['h_shifts'] * nmr_features['h_mask']
    c_in = nmr_features['c_shifts'] * nmr_features['c_mask']
    nmr_in = jnp.stack([h_in, c_in], axis=-1).reshape(B * A, 2).astype(jnp.float32)
    atom_feat = p['atom_emb'][atom_types].reshape(B * A, H)
    atom_repr = atom_encoder(p, coords.reshape(B * A, 3).astype(jnp.float32),
                             nmr_in, atom_feat, am.reshape(B * A, 1)
                             ).reshape(B, A, H)

    # ---------------- _cross_attention ----------------
    atom_pad = (1.0 - am).reshape(B, 1, A)
    s2a = p['smiles_to_atoms']
    h2 = attn_ln1(s2a, smiles_emb, atom_repr, atom_pad)
    enhanced_smiles = ffn_ln2(s2a, h2.reshape(B * S, H)).reshape(B, S, H)

    a2s = p['atoms_to_smiles']
    h3 = attn_ln1(a2s, atom_repr, enhanced_smiles, smiles_pad)
    # Last FFN also emits the merged task-head projections (lane-dense).
    enhanced_atoms_flat, heads = ffn_ln2(a2s, h3.reshape(B * A, H),
                                         heads_w=p['heads_w'], heads_b=p['heads_b'])
    enhanced_atoms = enhanced_atoms_flat.reshape(B, A, H)

    # ---------------- slice merged heads back out ----------------
    T = p['num_atom_types']
    preds = {
        'atom_type_logits': heads[:, :T].reshape(B, A, T),
        'coord_pred': heads[:, T:T + 3].reshape(B, A, 3),
        'h_shift_pred': heads[:, T + 3:T + 4].reshape(B, A, 1),
        'c_shift_pred': heads[:, T + 4:T + 5].reshape(B, A, 1),
        'atom_representations': enhanced_atoms,
        'smiles_representations': enhanced_smiles,
    }
    return preds


# --------------------------------------------------------------------------
# Demo
# --------------------------------------------------------------------------

if __name__ == "__main__":
    # Lane-dense demo sizes (H multiple of 128; S/A multiples of 8).
    B, S, A, H = 2, 8, 16, 128
    NUM_HEADS = 4
    VOCAB = 32
    NUM_ATOM_TYPES = 10
    FFN = 2 * H

    params = init_params(seed=0, vocab=VOCAB, max_seq=S, H=H,
                         num_atom_types=NUM_ATOM_TYPES, ffn_dim=FFN,
                         num_heads=NUM_HEADS)

    key = jax.random.PRNGKey(0)
    ks = jax.random.split(key, 8)
    input_ids = jax.random.randint(ks[0], (B, S), 0, VOCAB)
    attention_mask = jnp.concatenate(
        [jnp.ones((B, 6), jnp.int32), jnp.zeros((B, 2), jnp.int32)], axis=1)
    coords = jax.random.normal(ks[1], (B, A, 3), jnp.float32)
    atom_types = jax.random.randint(ks[2], (B, A), 0, NUM_ATOM_TYPES)
    atom_mask = jnp.concatenate(
        [jnp.ones((B, 12), jnp.float32), jnp.zeros((B, 4), jnp.float32)], axis=1)
    nmr_features = {
        'h_shifts': jax.random.normal(ks[3], (B, A), jnp.float32),
        'c_shifts': jax.random.normal(ks[4], (B, A), jnp.float32),
        'h_mask': (jax.random.uniform(ks[5], (B, A)) > 0.3).astype(jnp.float32),
        'c_mask': (jax.random.uniform(ks[6], (B, A)) > 0.3).astype(jnp.float32),
    }

    out = nmr_chemberta_forward(params, input_ids, attention_mask, coords,
                                atom_types, atom_mask, nmr_features)
    jax.tree_util.tree_map(jax.block_until_ready, out)

    # sanity on shapes
    assert out['atom_representations'].shape == (B, A, H)
    assert out['smiles_representations'].shape == (B, S, H)
    assert out['atom_type_logits'].shape == (B, A, NUM_ATOM_TYPES)
    assert out['coord_pred'].shape == (B, A, 3)
    assert out['h_shift_pred'].shape == (B, A, 1)
    assert out['c_shift_pred'].shape == (B, A, 1)
    assert all(map(lambda v: bool(jnp.all(jnp.isfinite(v))),
                   [out['atom_type_logits'], out['coord_pred'],
                    out['h_shift_pred'], out['c_shift_pred']]))
    print("KERNEL_OK")
</pallas_src>

<mosaic_0001>
module attributes {stable_mosaic.version = 11 : i64} {
  func.func @_attn_ln1_kernel(%arg0: i32, %arg1: i32, %arg2: memref<1x8x128xf32, #tpu.memory_space<vmem>>, %arg3: memref<1x8x128xf32, #tpu.memory_space<vmem>>, %arg4: memref<1x1x8xf32, #tpu.memory_space<vmem>>, %arg5: memref<1x128xf32, #tpu.memory_space<vmem>>, %arg6: memref<1x128xf32, #tpu.memory_space<vmem>>, %arg7: memref<128x128xbf16, #tpu.memory_space<vmem>>, %arg8: memref<1x128xf32, #tpu.memory_space<vmem>>, %arg9: memref<128x256xbf16, #tpu.memory_space<vmem>>, %arg10: memref<1x256xf32, #tpu.memory_space<vmem>>, %arg11: memref<128x128xbf16, #tpu.memory_space<vmem>>, %arg12: memref<1x128xf32, #tpu.memory_space<vmem>>, %arg13: memref<1x128xf32, #tpu.memory_space<vmem>>, %arg14: memref<1x128xf32, #tpu.memory_space<vmem>>, %arg15: memref<1x8x128xf32, #tpu.memory_space<vmem>>) attributes {dimension_semantics = [#tpu.dimension_semantics<parallel>, #tpu.dimension_semantics<parallel>], iteration_bounds = array<i64: 2, 1>, scalar_prefetch = 0 : i64, scratch_operands = 0 : i64, tpu.core_type = #tpu.core_type<tc>, window_params = [{transform_indices = @transform_0, window_bounds = array<i64: 1, 8, 128>}, {transform_indices = @transform_1, window_bounds = array<i64: 1, 8, 128>}, {transform_indices = @transform_2, window_bounds = array<i64: 1, 1, 8>}, {pipeline_mode = #tpu.pipeline_mode<synchronous>, transform_indices = @transform_3, window_bounds = array<i64: 1, 128>}, {pipeline_mode = #tpu.pipeline_mode<synchronous>, transform_indices = @transform_4, window_bounds = array<i64: 1, 128>}, {pipeline_mode = #tpu.pipeline_mode<synchronous>, transform_indices = @transform_5, window_bounds = array<i64: 128, 128>}, {pipeline_mode = #tpu.pipeline_mode<synchronous>, transform_indices = @transform_6, window_bounds = array<i64: 1, 128>}, {pipeline_mode = #tpu.pipeline_mode<synchronous>, transform_indices = @transform_7, window_bounds = array<i64: 128, 256>}, {pipeline_mode = #tpu.pipeline_mode<synchronous>, transform_indices = @transform_8, window_bounds = array<i64: 1, 256>}, {pipeline_mode = #tpu.pipeline_mode<synchronous>, transform_indices = @transform_9, window_bounds = array<i64: 128, 128>}, {pipeline_mode = #tpu.pipeline_mode<synchronous>, transform_indices = @transform_10, window_bounds = array<i64: 1, 128>}, {pipeline_mode = #tpu.pipeline_mode<synchronous>, transform_indices = @transform_11, window_bounds = array<i64: 1, 128>}, {pipeline_mode = #tpu.pipeline_mode<synchronous>, transform_indices = @transform_12, window_bounds = array<i64: 1, 128>}, {transform_indices = @transform_13, window_bounds = array<i64: 1, 8, 128>}]} {
    %c0 = arith.constant 0 : index
    %c0_0 = arith.constant 0 : index
    %c0_1 = arith.constant 0 : index
    %0 = vector.load %arg2[%c0, %c0_0, %c0_1] : memref<1x8x128xf32, #tpu.memory_space<vmem>>, vector<1x8x128xf32>
    %1 = vector.shape_cast %0 : vector<1x8x128xf32> to vector<8x128xf32>
    %c0_2 = arith.constant 0 : index
    %c0_3 = arith.constant 0 : index
    %c0_4 = arith.constant 0 : index
    %2 = vector.load %arg3[%c0_2, %c0_3, %c0_4] : memref<1x8x128xf32, #tpu.memory_space<vmem>>, vector<1x8x128xf32>
    %3 = vector.shape_cast %2 : vector<1x8x128xf32> to vector<8x128xf32>
    %c0_5 = arith.constant 0 : index
    %c0_6 = arith.constant 0 : index
    %c0_7 = arith.constant 0 : index
    %4 = vector.load %arg4[%c0_5, %c0_6, %c0_7] : memref<1x1x8xf32, #tpu.memory_space<vmem>>, vector<1x1x8xf32>
    %5 = vector.shape_cast %4 : vector<1x1x8xf32> to vector<1x8xf32>
    %c0_8 = arith.constant 0 : index
    %c0_9 = arith.constant 0 : index
    %6 = vector.load %arg5[%c0_8, %c0_9] : memref<1x128xf32, #tpu.memory_space<vmem>>, vector<1x128xf32>
    %c0_10 = arith.constant 0 : index
    %c0_11 = arith.constant 0 : index
    %7 = vector.load %arg6[%c0_10, %c0_11] : memref<1x128xf32, #tpu.memory_space<vmem>>, vector<1x128xf32>
    %cst = arith.constant dense<0.000000e+00> : vector<8xf32>
    %8 = vector.multi_reduction <add>, %1, %cst [1] : vector<8x128xf32> to vector<8xf32>
    %9 = vector.shape_cast %8 : vector<8xf32> to vector<8x1xf32>
    %cst_12 = arith.constant 1.280000e+02 : f32
    %10 = vector.broadcast %cst_12 : f32 to vector<8x1xf32>
    %11 = arith.divf %9, %10 : vector<8x1xf32>
    %12 = vector.broadcast %11 : vector<8x1xf32> to vector<8x128xf32>
    %13 = arith.subf %1, %12 : vector<8x128xf32>
    %14 = arith.mulf %13, %13 : vector<8x128xf32>
    %cst_13 = arith.constant dense<0.000000e+00> : vector<8xf32>
    %15 = vector.multi_reduction <add>, %14, %cst_13 [1] : vector<8x128xf32> to vector<8xf32>
    %16 = vector.shape_cast %15 : vector<8xf32> to vector<8x1xf32>
    %cst_14 = arith.constant 1.280000e+02 : f32
    %17 = vector.broadcast %cst_14 : f32 to vector<8x1xf32>
    %18 = arith.divf %16, %17 : vector<8x1xf32>
    %cst_15 = arith.constant 9.99999974E-6 : f32
    %19 = vector.broadcast %cst_15 : f32 to vector<8x1xf32>
    %20 = arith.addf %18, %19 : vector<8x1xf32>
    %21 = math.rsqrt %20 : vector<8x1xf32>
    %22 = vector.broadcast %21 : vector<8x1xf32> to vector<8x128xf32>
    %23 = arith.mulf %13, %22 : vector<8x128xf32>
    %24 = vector.broadcast %6 : vector<1x128xf32> to vector<8x128xf32>
    %25 = arith.mulf %23, %24 : vector<8x128xf32>
    %26 = vector.broadcast %7 : vector<1x128xf32> to vector<8x128xf32>
    %27 = arith.addf %25, %26 : vector<8x128xf32>
    %c0_16 = arith.constant 0 : index
    %c0_17 = arith.constant 0 : index
    %28 = vector.load %arg5[%c0_16, %c0_17] : memref<1x128xf32, #tpu.memory_space<vmem>>, vector<1x128xf32>
    %c0_18 = arith.constant 0 : index
    %c0_19 = arith.constant 0 : index
    %29 = vector.load %arg6[%c0_18, %c0_19] : memref<1x128xf32, #tpu.memory_space<vmem>>, vector<1x128xf32>
    %cst_20 = arith.constant dense<0.000000e+00> : vector<8xf32>
    %30 = vector.multi_reduction <add>, %3, %cst_20 [1] : vector<8x128xf32> to vector<8xf32>
    %31 = vector.shape_cast %30 : vector<8xf32> to vector<8x1xf32>
    %cst_21 = arith.constant 1.280000e+02 : f32
    %32 = vector.broadcast %cst_21 : f32 to vector<8x1xf32>
    %33 = arith.divf %31, %32 : vector<8x1xf32>
    %34 = vector.broadcast %33 : vector<8x1xf32> to vector<8x128xf32>
    %35 = arith.subf %3, %34 : vector<8x128xf32>
    %36 = arith.mulf %35, %35 : vector<8x128xf32>
    %cst_22 = arith.constant dense<0.000000e+00> : vector<8xf32>
    %37 = vector.multi_reduction <add>, %36, %cst_22 [1] : vector<8x128xf32> to vector<8xf32>
    %38 = vector.shape_cast %37 : vector<8xf32> to vector<8x1xf32>
    %cst_23 = arith.constant 1.280000e+02 : f32
    %39 = vector.broadcast %cst_23 : f32 to vector<8x1xf32>
    %40 = arith.divf %38, %39 : vector<8x1xf32>
    %cst_24 = arith.constant 9.99999974E-6 : f32
    %41 = vector.broadcast %cst_24 : f32 to vector<8x1xf32>
    %42 = arith.addf %40, %41 : vector<8x1xf32>
    %43 = math.rsqrt %42 : vector<8x1xf32>
    %44 = vector.broadcast %43 : vector<8x1xf32> to vector<8x128xf32>
    %45 = arith.mulf %35, %44 : vector<8x128xf32>
    %46 = vector.broadcast %28 : vector<1x128xf32> to vector<8x128xf32>
    %47 = arith.mulf %45, %46 : vector<8x128xf32>
    %48 = vector.broadcast %29 : vector<1x128xf32> to vector<8x128xf32>
    %49 = arith.addf %47, %48 : vector<8x128xf32>
    %50 = arith.truncf %27 : vector<8x128xf32> to vector<8x128xbf16>
    %c0_25 = arith.constant 0 : index
    %c0_26 = arith.constant 0 : index
    %51 = vector.load %arg7[%c0_25, %c0_26] : memref<128x128xbf16, #tpu.memory_space<vmem>>, vector<128x128xbf16>
    %cst_27 = arith.constant dense<0.000000e+00> : vector<8x128xf32>
    %52 = tpu.matmul %50, %51, %cst_27 {dimension_numbers = #tpu.dot_dimension_numbers<[1], [0], [0], [1], [0, 0, 1, 1], [], []>} : vector<8x128xbf16>, vector<128x128xbf16>, vector<8x128xf32> -> vector<8x128xf32>
    %c0_28 = arith.constant 0 : index
    %c0_29 = arith.constant 0 : index
    %53 = vector.load %arg8[%c0_28, %c0_29] : memref<1x128xf32, #tpu.memory_space<vmem>>, vector<1x128xf32>
    %54 = vector.broadcast %53 : vector<1x128xf32> to vector<8x128xf32>
    %55 = arith.addf %52, %54 : vector<8x128xf32>
    %56 = arith.truncf %49 : vector<8x128xf32> to vector<8x128xbf16>
    %c0_30 = arith.constant 0 : index
    %c0_31 = arith.constant 0 : index
    %57 = vector.load %arg9[%c0_30, %c0_31] : memref<128x256xbf16, #tpu.memory_space<vmem>>, vector<128x256xbf16>
    %cst_32 = arith.constant dense<0.000000e+00> : vector<8x256xf32>
    %58 = tpu.matmul %56, %57, %cst_32 {dimension_numbers = #tpu.dot_dimension_numbers<[1], [0], [0], [1], [0, 0, 1, 1], [], []>} : vector<8x128xbf16>, vector<128x256xbf16>, vector<8x256xf32> -> vector<8x256xf32>
    %c0_33 = arith.constant 0 : index
    %c0_34 = arith.constant 0 : index
    %59 = vector.load %arg10[%c0_33, %c0_34] : memref<1x256xf32, #tpu.memory_space<vmem>>, vector<1x256xf32>
    %60 = vector.broadcast %59 : vector<1x256xf32> to vector<8x256xf32>
    %61 = arith.addf %58, %60 : vector<8x256xf32>
    %cst_35 = arith.constant 1.000000e+09 : f32
    %62 = vector.broadcast %cst_35 : f32 to vector<1x8xf32>
    %63 = arith.mulf %5, %62 : vector<1x8xf32>
    %64 = vector.extract_strided_slice %55 {offsets = [0, 0], sizes = [8, 32], strides = [1, 1]} : vector<8x128xf32> to vector<8x32xf32>
    %65 = arith.truncf %64 : vector<8x32xf32> to vector<8x32xbf16>
    %66 = vector.extract_strided_slice %61 {offsets = [0, 0], sizes = [8, 32], strides = [1, 1]} : vector<8x256xf32> to vector<8x32xf32>
    %67 = arith.truncf %66 : vector<8x32xf32> to vector<8x32xbf16>
    %68 = vector.extract_strided_slice %61 {offsets = [0, 128], sizes = [8, 32], strides = [1, 1]} : vector<8x256xf32> to vector<8x32xf32>
    %69 = arith.truncf %68 : vector<8x32xf32> to vector<8x32xbf16>
    %cst_36 = arith.constant dense<0.000000e+00> : vector<8x8xf32>
    %70 = tpu.matmul %65, %67, %cst_36 {dimension_numbers = #tpu.dot_dimension_numbers<[1], [1], [0], [0], [0, 0, 1, 0], [], []>} : vector<8x32xbf16>, vector<8x32xbf16>, vector<8x8xf32> -> vector<8x8xf32>
    %cst_37 = arith.constant 0.176776692 : f32
    %71 = vector.broadcast %cst_37 : f32 to vector<8x8xf32>
    %72 = arith.mulf %70, %71 : vector<8x8xf32>
    %73 = vector.broadcast %63 : vector<1x8xf32> to vector<8x8xf32>
    %74 = arith.subf %72, %73 : vector<8x8xf32>
    %cst_38 = arith.constant dense<0xFF800000> : vector<8xf32>
    %75 = vector.multi_reduction <maximumf>, %74, %cst_38 [1] : vector<8x8xf32> to vector<8xf32>
    %76 = vector.shape_cast %75 : vector<8xf32> to vector<8x1xf32>
    %77 = vector.broadcast %76 : vector<8x1xf32> to vector<8x8xf32>
    %78 = arith.subf %74, %77 : vector<8x8xf32>
    %79 = math.exp %78 : vector<8x8xf32>
    %cst_39 = arith.constant dense<0.000000e+00> : vector<8xf32>
    %80 = vector.multi_reduction <add>, %79, %cst_39 [1] : vector<8x8xf32> to vector<8xf32>
    %81 = vector.shape_cast %80 : vector<8xf32> to vector<8x1xf32>
    %82 = tpu.reciprocal %81 {approx = true} : vector<8x1xf32> -> vector<8x1xf32>
    %83 = vector.broadcast %82 : vector<8x1xf32> to vector<8x8xf32>
    %84 = arith.mulf %79, %83 : vector<8x8xf32>
    %85 = arith.truncf %84 : vector<8x8xf32> to vector<8x8xbf16>
    %cst_40 = arith.constant dense<0.000000e+00> : vector<8x32xf32>
    %86 = tpu.matmul %85, %69, %cst_40 {dimension_numbers = #tpu.dot_dimension_numbers<[1], [0], [0], [1], [0, 0, 1, 1], [], []>} : vector<8x8xbf16>, vector<8x32xbf16>, vector<8x32xf32> -> vector<8x32xf32>
    %87 = vector.extract_strided_slice %55 {offsets = [0, 32], sizes = [8, 32], strides = [1, 1]} : vector<8x128xf32> to vector<8x32xf32>
    %88 = arith.truncf %87 : vector<8x32xf32> to vector<8x32xbf16>
    %89 = vector.extract_strided_slice %61 {offsets = [0, 32], sizes = [8, 32], strides = [1, 1]} : vector<8x256xf32> to vector<8x32xf32>
    %90 = arith.truncf %89 : vector<8x32xf32> to vector<8x32xbf16>
    %91 = vector.extract_strided_slice %61 {offsets = [0, 160], sizes = [8, 32], strides = [1, 1]} : vector<8x256xf32> to vector<8x32xf32>
    %92 = arith.truncf %91 : vector<8x32xf32> to vector<8x32xbf16>
    %cst_41 = arith.constant dense<0.000000e+00> : vector<8x8xf32>
    %93 = tpu.matmul %88, %90, %cst_41 {dimension_numbers = #tpu.dot_dimension_numbers<[1], [1], [0], [0], [0, 0, 1, 0], [], []>} : vector<8x32xbf16>, vector<8x32xbf16>, vector<8x8xf32> -> vector<8x8xf32>
    %cst_42 = arith.constant 0.176776692 : f32
    %94 = vector.broadcast %cst_42 : f32 to vector<8x8xf32>
    %95 = arith.mulf %93, %94 : vector<8x8xf32>
    %96 = vector.broadcast %63 : vector<1x8xf32> to vector<8x8xf32>
    %97 = arith.subf %95, %96 : vector<8x8xf32>
    %cst_43 = arith.constant dense<0xFF800000> : vector<8xf32>
    %98 = vector.multi_reduction <maximumf>, %97, %cst_43 [1] : vector<8x8xf32> to vector<8xf32>
    %99 = vector.shape_cast %98 : vector<8xf32> to vector<8x1xf32>
    %100 = vector.broadcast %99 : vector<8x1xf32> to vector<8x8xf32>
    %101 = arith.subf %97, %100 : vector<8x8xf32>
    %102 = math.exp %101 : vector<8x8xf32>
    %cst_44 = arith.constant dense<0.000000e+00> : vector<8xf32>
    %103 = vector.multi_reduction <add>, %102, %cst_44 [1] : vector<8x8xf32> to vector<8xf32>
    %104 = vector.shape_cast %103 : vector<8xf32> to vector<8x1xf32>
    %105 = tpu.reciprocal %104 {approx = true} : vector<8x1xf32> -> vector<8x1xf32>
    %106 = vector.broadcast %105 : vector<8x1xf32> to vector<8x8xf32>
    %107 = arith.mulf %102, %106 : vector<8x8xf32>
    %108 = arith.truncf %107 : vector<8x8xf32> to vector<8x8xbf16>
    %cst_45 = arith.constant dense<0.000000e+00> : vector<8x32xf32>
    %109 = tpu.matmul %108, %92, %cst_45 {dimension_numbers = #tpu.dot_dimension_numbers<[1], [0], [0], [1], [0, 0, 1, 1], [], []>} : vector<8x8xbf16>, vector<8x32xbf16>, vector<8x32xf32> -> vector<8x32xf32>
    %110 = vector.extract_strided_slice %55 {offsets = [0, 64], sizes = [8, 32], strides = [1, 1]} : vector<8x128xf32> to vector<8x32xf32>
    %111 = arith.truncf %110 : vector<8x32xf32> to vector<8x32xbf16>
    %112 = vector.extract_strided_slice %61 {offsets = [0, 64], sizes = [8, 32], strides = [1, 1]} : vector<8x256xf32> to vector<8x32xf32>
    %113 = arith.truncf %112 : vector<8x32xf32> to vector<8x32xbf16>
    %114 = vector.extract_strided_slice %61 {offsets = [0, 192], sizes = [8, 32], strides = [1, 1]} : vector<8x256xf32> to vector<8x32xf32>
    %115 = arith.truncf %114 : vector<8x32xf32> to vector<8x32xbf16>
    %cst_46 = arith.constant dense<0.000000e+00> : vector<8x8xf32>
    %116 = tpu.matmul %111, %113, %cst_46 {dimension_numbers = #tpu.dot_dimension_numbers<[1], [1], [0], [0], [0, 0, 1, 0], [], []>} : vector<8x32xbf16>, vector<8x32xbf16>, vector<8x8xf32> -> vector<8x8xf32>
    %cst_47 = arith.constant 0.176776692 : f32
    %117 = vector.broadcast %cst_47 : f32 to vector<8x8xf32>
    %118 = arith.mulf %116, %117 : vector<8x8xf32>
    %119 = vector.broadcast %63 : vector<1x8xf32> to vector<8x8xf32>
    %120 = arith.subf %118, %119 : vector<8x8xf32>
    %cst_48 = arith.constant dense<0xFF800000> : vector<8xf32>
    %121 = vector.multi_reduction <maximumf>, %120, %cst_48 [1] : vector<8x8xf32> to vector<8xf32>
    %122 = vector.shape_cast %121 : vector<8xf32> to vector<8x1xf32>
    %123 = vector.broadcast %122 : vector<8x1xf32> to vector<8x8xf32>
    %124 = arith.subf %120, %123 : vector<8x8xf32>
    %125 = math.exp %124 : vector<8x8xf32>
    %cst_49 = arith.constant dense<0.000000e+00> : vector<8xf32>
    %126 = vector.multi_reduction <add>, %125, %cst_49 [1] : vector<8x8xf32> to vector<8xf32>
    %127 = vector.shape_cast %126 : vector<8xf32> to vector<8x1xf32>
    %128 = tpu.reciprocal %127 {approx = true} : vector<8x1xf32> -> vector<8x1xf32>
    %129 = vector.broadcast %128 : vector<8x1xf32> to vector<8x8xf32>
    %130 = arith.mulf %125, %129 : vector<8x8xf32>
    %131 = arith.truncf %130 : vector<8x8xf32> to vector<8x8xbf16>
    %cst_50 = arith.constant dense<0.000000e+00> : vector<8x32xf32>
    %132 = tpu.matmul %131, %115, %cst_50 {dimension_numbers = #tpu.dot_dimension_numbers<[1], [0], [0], [1], [0, 0, 1, 1], [], []>} : vector<8x8xbf16>, vector<8x32xbf16>, vector<8x32xf32> -> vector<8x32xf32>
    %133 = vector.extract_strided_slice %55 {offsets = [0, 96], sizes = [8, 32], strides = [1, 1]} : vector<8x128xf32> to vector<8x32xf32>
    %134 = arith.truncf %133 : vector<8x32xf32> to vector<8x32xbf16>
    %135 = vector.extract_strided_slice %61 {offsets = [0, 96], sizes = [8, 32], strides = [1, 1]} : vector<8x256xf32> to vector<8x32xf32>
    %136 = arith.truncf %135 : vector<8x32xf32> to vector<8x32xbf16>
    %137 = vector.extract_strided_slice %61 {offsets = [0, 224], sizes = [8, 32], strides = [1, 1]} : vector<8x256xf32> to vector<8x32xf32>
    %138 = arith.truncf %137 : vector<8x32xf32> to vector<8x32xbf16>
    %cst_51 = arith.constant dense<0.000000e+00> : vector<8x8xf32>
    %139 = tpu.matmul %134, %136, %cst_51 {dimension_numbers = #tpu.dot_dimension_numbers<[1], [1], [0], [0], [0, 0, 1, 0], [], []>} : vector<8x32xbf16>, vector<8x32xbf16>, vector<8x8xf32> -> vector<8x8xf32>
    %cst_52 = arith.constant 0.176776692 : f32
    %140 = vector.broadcast %cst_52 : f32 to vector<8x8xf32>
    %141 = arith.mulf %139, %140 : vector<8x8xf32>
    %142 = vector.broadcast %63 : vector<1x8xf32> to vector<8x8xf32>
    %143 = arith.subf %141, %142 : vector<8x8xf32>
    %cst_53 = arith.constant dense<0xFF800000> : vector<8xf32>
    %144 = vector.multi_reduction <maximumf>, %143, %cst_53 [1] : vector<8x8xf32> to vector<8xf32>
    %145 = vector.shape_cast %144 : vector<8xf32> to vector<8x1xf32>
    %146 = vector.broadcast %145 : vector<8x1xf32> to vector<8x8xf32>
    %147 = arith.subf %143, %146 : vector<8x8xf32>
    %148 = math.exp %147 : vector<8x8xf32>
    %cst_54 = arith.constant dense<0.000000e+00> : vector<8xf32>
    %149 = vector.multi_reduction <add>, %148, %cst_54 [1] : vector<8x8xf32> to vector<8xf32>
    %150 = vector.shape_cast %149 : vector<8xf32> to vector<8x1xf32>
    %151 = tpu.reciprocal %150 {approx = true} : vector<8x1xf32> -> vector<8x1xf32>
    %152 = vector.broadcast %151 : vector<8x1xf32> to vector<8x8xf32>
    %153 = arith.mulf %148, %152 : vector<8x8xf32>
    %154 = arith.truncf %153 : vector<8x8xf32> to vector<8x8xbf16>
    %cst_55 = arith.constant dense<0.000000e+00> : vector<8x32xf32>
    %155 = tpu.matmul %154, %138, %cst_55 {dimension_numbers = #tpu.dot_dimension_numbers<[1], [0], [0], [1], [0, 0, 1, 1], [], []>} : vector<8x8xbf16>, vector<8x32xbf16>, vector<8x32xf32> -> vector<8x32xf32>
    %156 = tpu.concatenate %86, %109, %132, %155 in 1 : vector<8x32xf32>, vector<8x32xf32>, vector<8x32xf32>, vector<8x32xf32> -> vector<8x128xf32>
    %157 = arith.truncf %156 : vector<8x128xf32> to vector<8x128xbf16>
    %c0_56 = arith.constant 0 : index
    %c0_57 = arith.constant 0 : index
    %158 = vector.load %arg11[%c0_56, %c0_57] : memref<128x128xbf16, #tpu.memory_space<vmem>>, vector<128x128xbf16>
    %cst_58 = arith.constant dense<0.000000e+00> : vector<8x128xf32>
    %159 = tpu.matmul %157, %158, %cst_58 {dimension_numbers = #tpu.dot_dimension_numbers<[1], [0], [0], [1], [0, 0, 1, 1], [], []>} : vector<8x128xbf16>, vector<128x128xbf16>, vector<8x128xf32> -> vector<8x128xf32>
    %c0_59 = arith.constant 0 : index
    %c0_60 = arith.constant 0 : index
    %160 = vector.load %arg12[%c0_59, %c0_60] : memref<1x128xf32, #tpu.memory_space<vmem>>, vector<1x128xf32>
    %161 = vector.broadcast %160 : vector<1x128xf32> to vector<8x128xf32>
    %162 = arith.addf %159, %161 : vector<8x128xf32>
    %163 = arith.addf %27, %162 : vector<8x128xf32>
    %c0_61 = arith.constant 0 : index
    %c0_62 = arith.constant 0 : index
    %164 = vector.load %arg13[%c0_61, %c0_62] : memref<1x128xf32, #tpu.memory_space<vmem>>, vector<1x128xf32>
    %c0_63 = arith.constant 0 : index
    %c0_64 = arith.constant 0 : index
    %165 = vector.load %arg14[%c0_63, %c0_64] : memref<1x128xf32, #tpu.memory_space<vmem>>, vector<1x128xf32>
    %cst_65 = arith.constant dense<0.000000e+00> : vector<8xf32>
    %166 = vector.multi_reduction <add>, %163, %cst_65 [1] : vector<8x128xf32> to vector<8xf32>
    %167 = vector.shape_cast %166 : vector<8xf32> to vector<8x1xf32>
    %cst_66 = arith.constant 1.280000e+02 : f32
    %168 = vector.broadcast %cst_66 : f32 to vector<8x1xf32>
    %169 = arith.divf %167, %168 : vector<8x1xf32>
    %170 = vector.broadcast %169 : vector<8x1xf32> to vector<8x128xf32>
    %171 = arith.subf %163, %170 : vector<8x128xf32>
    %172 = arith.mulf %171, %171 : vector<8x128xf32>
    %cst_67 = arith.constant dense<0.000000e+00> : vector<8xf32>
    %173 = vector.multi_reduction <add>, %172, %cst_67 [1] : vector<8x128xf32> to vector<8xf32>
    %174 = vector.shape_cast %173 : vector<8xf32> to vector<8x1xf32>
    %cst_68 = arith.constant 1.280000e+02 : f32
    %175 = vector.broadcast %cst_68 : f32 to vector<8x1xf32>
    %176 = arith.divf %174, %175 : vector<8x1xf32>
    %cst_69 = arith.constant 9.99999974E-6 : f32
    %177 = vector.broadcast %cst_69 : f32 to vector<8x1xf32>
    %178 = arith.addf %176, %177 : vector<8x1xf32>
    %179 = math.rsqrt %178 : vector<8x1xf32>
    %180 = vector.broadcast %179 : vector<8x1xf32> to vector<8x128xf32>
    %181 = arith.mulf %171, %180 : vector<8x128xf32>
    %182 = vector.broadcast %164 : vector<1x128xf32> to vector<8x128xf32>
    %183 = arith.mulf %181, %182 : vector<8x128xf32>
    %184 = vector.broadcast %165 : vector<1x128xf32> to vector<8x128xf32>
    %185 = arith.addf %183, %184 : vector<8x128xf32>
    %c0_70 = arith.constant 0 : index
    %c0_71 = arith.constant 0 : index
    %c0_72 = arith.constant 0 : index
    %186 = vector.load %arg15[%c0_70, %c0_71, %c0_72] : memref<1x8x128xf32, #tpu.memory_space<vmem>>, vector<1x8x128xf32>
    %187 = vector.shape_cast %186 : vector<1x8x128xf32> to vector<8x128xf32>
    %188 = vector.shape_cast %185 : vector<8x128xf32> to vector<1x8x128xf32>
    tpu.vector_store %arg15[%c0_70, %c0_71, %c0_72], %188 {strides = array<i32>} : memref<1x8x128xf32, #tpu.memory_space<vmem>>, vector<1x8x128xf32>,
    return
  }
  func.func @transform_0(%arg0: i32, %arg1: i32) -> (i32, i32, i32) {
    %c0_i32 = arith.constant 0 : i32
    %c0_i32_0 = arith.constant 0 : i32
    return %arg0, %arg1, %c0_i32 : i32, i32, i32
  }
  func.func @transform_1(%arg0: i32, %arg1: i32) -> (i32, i32, i32) {
    %c0_i32 = arith.constant 0 : i32
    %c0_i32_0 = arith.constant 0 : i32
    %c0_i32_1 = arith.constant 0 : i32
    return %arg0, %c0_i32, %c0_i32_0 : i32, i32, i32
  }
  func.func @transform_2(%arg0: i32, %arg1: i32) -> (i32, i32, i32) {
    %c0_i32 = arith.constant 0 : i32
    %c0_i32_0 = arith.constant 0 : i32
    %c0_i32_1 = arith.constant 0 : i32
    return %arg0, %c0_i32, %c0_i32_0 : i32, i32, i32
  }
  func.func @transform_3(%arg0: i32, %arg1: i32) -> (i32, i32) {
    %c0_i32 = arith.constant 0 : i32
    %c0_i32_0 = arith.constant 0 : i32
    %c0_i32_1 = arith.constant 0 : i32
    return %c0_i32, %c0_i32_0 : i32, i32
  }
  func.func @transform_4(%arg0: i32, %arg1: i32) -> (i32, i32) {
    %c0_i32 = arith.constant 0 : i32
    %c0_i32_0 = arith.constant 0 : i32
    %c0_i32_1 = arith.constant 0 : i32
    return %c0_i32, %c0_i32_0 : i32, i32
  }
  func.func @transform_5(%arg0: i32, %arg1: i32) -> (i32, i32) {
    %c0_i32 = arith.constant 0 : i32
    %c0_i32_0 = arith.constant 0 : i32
    %c0_i32_1 = arith.constant 0 : i32
    return %c0_i32, %c0_i32_0 : i32, i32
  }
  func.func @transform_6(%arg0: i32, %arg1: i32) -> (i32, i32) {
    %c0_i32 = arith.constant 0 : i32
    %c0_i32_0 = arith.constant 0 : i32
    %c0_i32_1 = arith.constant 0 : i32
    return %c0_i32, %c0_i32_0 : i32, i32
  }
  func.func @transform_7(%arg0: i32, %arg1: i32) -> (i32, i32) {
    %c0_i32 = arith.constant 0 : i32
    %c0_i32_0 = arith.constant 0 : i32
    %c0_i32_1 = arith.constant 0 : i32
    return %c0_i32, %c0_i32_0 : i32, i32
  }
  func.func @transform_8(%arg0: i32, %arg1: i32) -> (i32, i32) {
    %c0_i32 = arith.constant 0 : i32
    %c0_i32_0 = arith.constant 0 : i32
    %c0_i32_1 = arith.constant 0 : i32
    return %c0_i32, %c0_i32_0 : i32, i32
  }
  func.func @transform_9(%arg0: i32, %arg1: i32) -> (i32, i32) {
    %c0_i32 = arith.constant 0 : i32
    %c0_i32_0 = arith.constant 0 : i32
    %c0_i32_1 = arith.constant 0 : i32
    return %c0_i32, %c0_i32_0 : i32, i32
  }
  func.func @transform_10(%arg0: i32, %arg1: i32) -> (i32, i32) {
    %c0_i32 = arith.constant 0 : i32
    %c0_i32_0 = arith.constant 0 : i32
    %c0_i32_1 = arith.constant 0 : i32
    return %c0_i32, %c0_i32_0 : i32, i32
  }
  func.func @transform_11(%arg0: i32, %arg1: i32) -> (i32, i32) {
    %c0_i32 = arith.constant 0 : i32
    %c0_i32_0 = arith.constant 0 : i32
    %c0_i32_1 = arith.constant 0 : i32
    return %c0_i32, %c0_i32_0 : i32, i32
  }
  func.func @transform_12(%arg0: i32, %arg1: i32) -> (i32, i32) {
    %c0_i32 = arith.constant 0 : i32
    %c0_i32_0 = arith.constant 0 : i32
    %c0_i32_1 = arith.constant 0 : i32
    return %c0_i32, %c0_i32_0 : i32, i32
  }
  func.func @transform_13(%arg0: i32, %arg1: i32) -> (i32, i32, i32) {
    %c0_i32 = arith.constant 0 : i32
    %c0_i32_0 = arith.constant 0 : i32
    return %arg0, %arg1, %c0_i32 : i32, i32, i32
  }
}

</mosaic_0001>

<llo_original>
// kernel: tpu_custom_call.1
$region0: #{tpu_custom_call.1}
  #allocation0 [shape = 'u32[]', space=smem, size = 0x4, offset = 0x4, fixed_abs, tag = 'smem constant byte address 0x4 - core index']
  #allocation1 [shape = 'u32[72,128]{1,0:T(1,128)}', space=vmem, size = 0x9000, scoped, tag = 'internal scratch']
  %s0 = inlined_call_operand.hbm [shape: f32[2,8,128], index: 0, kind: input, shape index: {}]
  %s1 = inlined_call_operand.hbm [shape: f32[2,8,128], index: 1, kind: input, shape index: {}]
  %s2 = inlined_call_operand.hbm [shape: f32[2,1,8], index: 2, kind: input, shape index: {}]
  %s3 = inlined_call_operand.vmem [shape: f32[1,128], index: 3, kind: input, shape index: {}]
  %s4 = inlined_call_operand.hbm [shape: f32[1,128], index: 4, kind: input, shape index: {}]
  %s5 = inlined_call_operand.hbm [shape: bf16[128,128], index: 5, kind: input, shape index: {}]
  %s6 = inlined_call_operand.vmem [shape: f32[1,128], index: 6, kind: input, shape index: {}]
  %s7 = inlined_call_operand.hbm [shape: bf16[128,256], index: 7, kind: input, shape index: {}]
  %s8 = inlined_call_operand.vmem [shape: f32[1,256], index: 8, kind: input, shape index: {}]
  %s9 = inlined_call_operand.hbm [shape: bf16[128,128], index: 9, kind: input, shape index: {}]
  %s10 = inlined_call_operand.vmem [shape: f32[1,128], index: 10, kind: input, shape index: {}]
  %s11 = inlined_call_operand.vmem [shape: f32[1,128], index: 11, kind: input, shape index: {}]
  %s12 = inlined_call_operand.vmem [shape: f32[1,128], index: 12, kind: input, shape index: {}]
  %s13 = inlined_call_operand.hbm [shape: f32[2,8,128], index: 13, kind: output, shape index: {}]
  %s14 = sld [smem:[#allocation0]]
  $region113: #{tpu_custom_call.1} parent=0
    _
  %s16 = ssub.s32 1, %s14
  %s17 = scalar_select 0, %s16, %s14
  $region1: #{tpu_custom_call.1} parent=0
    #allocation2 [shape = 'u8[8192]{0}', space=vmem, size = 0x2000, scoped, tag = 'input window, operand 0']
    #allocation3 [shape = 's32[2]{0}', space=sflag, size = 0x8, scoped, tag = 'scoped memory for tpu_custom_call.1']
    #allocation4 [shape = 's32[2]{0}', space=sflag, size = 0x8, scoped, tag = 'scoped memory for tpu_custom_call.1']
    #allocation5 [shape = 'u8[8192]{0}', space=vmem, size = 0x2000, scoped, tag = 'input window, operand 1']
    #allocation6 [shape = 's32[2]{0}', space=sflag, size = 0x8, scoped, tag = 'scoped memory for tpu_custom_call.1']
    #allocation7 [shape = 'u8[1024]{0}', space=vmem, size = 0x400, scoped, tag = 'input window, operand 2']
    #allocation8 [shape = 'u8[512]{0}', space=vmem, size = 0x400, scoped, tag = 'input window, operand 4, single buffered']
    #allocation9 [shape = 's32[1]{0}', space=sflag, size = 0x4, scoped, tag = 'scoped memory for tpu_custom_call.1']
    #allocation10 [shape = 'u8[32768]{0}', space=vmem, size = 0x8000, scoped, tag = 'input window, operand 5, single buffered']
    #allocation11 [shape = 'u8[65536]{0}', space=vmem, size = 0x10000, scoped, tag = 'input window, operand 7, single buffered']
    #allocation12 [shape = 's32[1]{0}', space=sflag, size = 0x4, scoped, tag = 'scoped memory for tpu_custom_call.1']
    #allocation13 [shape = 'u8[32768]{0}', space=vmem, size = 0x8000, scoped, tag = 'input window, operand 9, single buffered']
    #allocation14 [shape = 'u8[8192]{0}', space=vmem, size = 0x2000, scoped, tag = 'output window, operand 0']
    %18 = vsyncpa [#allocation3], 0
    %s19 = scalar_lea.sflag [#allocation3], 1
    %20 = vsyncpa %s19, 0
    %21 = vsyncpa [#allocation6], 0
    %s22 = scalar_lea.sflag [#allocation6], 1
    %23 = vsyncpa %s22, 0
    %24 = vsyncpa [#allocation9], 0
    %25 = vsyncpa [#allocation12], 0
    %26 = vsyncpa [#allocation4], 0
    %s27 = scalar_lea.sflag [#allocation4], 1
    %28 = vsyncpa %s27, 0
    loop: start=0, step=1, limit=4
    $region2: #{tpu_custom_call.1} parent=1 // loop_pre_header
      _
    $region3: #{tpu_custom_call.1} parent=1 // loop_header
      %s30 = sphi 0, %s34
      %p31 = scmp.ge.s32.totalorder %s30, 4
      %s37 = sphi 0, %s49
      %s38 = sphi 0, %s45
      %s39 = sphi 0, %s37
      %s40 = sphi 0, %s38
      %s41 = sphi 0, %s39
      %s42 = sphi 0, %s40
      %s54 = sphi 0, %s56
      %s57 = sphi 0, %s54
      %s58 = sphi 0, %s57
      %s74 = sphi 0, %s58
      %s80 = sphi 0, %s82
      %s83 = sphi 0, %s80
      %s84 = sphi 0, %s83
      %s100 = sphi 0, %s84
      %s106 = sphi 0, %s108
      %s109 = sphi 0, %s106
      %s110 = sphi 0, %s109
      %s126 = sphi 0, %s110
      %s130 = sphi 0, %s130
      %s132 = sphi 0, %s130
      %s133 = sphi 0, %s132
      %s147 = sphi 0, %s133
      %s151 = sphi 0, %s151
      %s153 = sphi 0, %s151
      %s154 = sphi 0, %s153
      %s168 = sphi 0, %s154
      %s172 = sphi 0, %s172
      %s174 = sphi 0, %s172
      %s175 = sphi 0, %s174
      %s189 = sphi 0, %s175
      %s193 = sphi 0, %s193
      %s195 = sphi 0, %s193
      %s196 = sphi 0, %s195
      %s210 = sphi 0, %s196
      %s214 = sphi 0, %s214
      %s216 = sphi 0, %s214
      %s217 = sphi 0, %s216
      %s231 = sphi 0, %s217
      %s235 = sphi 0, %s235
      %s237 = sphi 0, %s235
      %s238 = sphi 0, %s237
      %s252 = sphi 0, %s238
      %s256 = sphi 0, %s256
      %s258 = sphi 0, %s256
      %s259 = sphi 0, %s258
      %s273 = sphi 0, %s259
      %s277 = sphi 0, %s277
      %s279 = sphi 0, %s277
      %s280 = sphi 0, %s279
      %s294 = sphi 0, %s280
      %s298 = sphi 0, %s298
      %s300 = sphi 0, %s298
      %s301 = sphi 0, %s300
      %s315 = sphi 0, %s301
      %s319 = sphi 0, %s319
      %s321 = sphi 0, %s319
      %s322 = sphi 0, %s321
      %s336 = sphi 0, %s322
      %s344 = sphi 0, %s346
      %s347 = sphi 0, %s344
      %s348 = sphi 0, %s347
      %s364 = sphi 0, %s348
    $region4: #{tpu_custom_call.1} parent=1 // loop_header_branch
      %33 = sbr.rel (%p31) target = $region8
    $region5: #{tpu_custom_call.1} parent=1 // loop_body
      %s35 = ssub.s32 %s30, 1
      %s36 = ssub.s32 %s30, 2
      %s43 = sadd.s32 1, %s38
      %p44 = scmp.ge.s32.totalorder %s43, 1
      %s45 = scalar_select %p44, 0, %s43
      %s46 = sadd.s32 1, %s37
      %s47 = scalar_select %p44, %s46, %s37
      %p48 = scmp.ge.s32.totalorder %s47, 2
      %s49 = scalar_select %p48, 0, %s47
      %s50 = ssub.s32 %s37, %s49
      %s51 = ssub.s32 %s38, %s45
      %s52 = sor.u32 %s50, %s51
      %p53 = scmp.eq.s32.totalorder %s52, 0
      %s55 = sadd.s32 %s54, 1
      %s56 = scalar_select %p53, %s54, %s55
      %p59 = pneg %p53
      %p60 = scmp.eq.s32.totalorder %s30, 1
      %p61 = por %p59, %p60
      %p62 = scmp.ne.s32.totalorder %s54, %s57
      %p63 = scmp.eq.s32.totalorder %s30, 0
      %p64 = por %p62, %p63
      %p65 = scmp.ne.s32.totalorder %s54, %s57
      %p66 = scmp.eq.s32.totalorder %s35, 1
      %p67 = por %p65, %p66
      %p68 = scmp.ne.s32.totalorder %s57, %s58
      %p69 = scmp.eq.s32.totalorder %s35, 0
      %p70 = por %p68, %p69
      %p71 = scmp.ne.s32.totalorder %s57, %s58
      %p72 = scmp.eq.s32.totalorder %s36, 1
      %p73 = por %p71, %p72
      %p75 = scmp.ne.s32.totalorder %s58, %s74
      %p76 = scmp.eq.s32.totalorder %s36, 0
      %p77 = por %p75, %p76
      %s78 = ssub.s32 %s37, %s49
      %p79 = scmp.eq.s32.totalorder %s78, 0
      %s81 = sadd.s32 %s80, 1
      %s82 = scalar_select %p79, %s80, %s81
      %p85 = pneg %p79
      %p86 = scmp.eq.s32.totalorder %s30, 1
      %p87 = por %p85, %p86
      %p88 = scmp.ne.s32.totalorder %s80, %s83
      %p89 = scmp.eq.s32.totalorder %s30, 0
      %p90 = por %p88, %p89
      %p91 = scmp.ne.s32.totalorder %s80, %s83
      %p92 = scmp.eq.s32.totalorder %s35, 1
      %p93 = por %p91, %p92
      %p94 = scmp.ne.s32.totalorder %s83, %s84
      %p95 = scmp.eq.s32.totalorder %s35, 0
      %p96 = por %p94, %p95
      %p97 = scmp.ne.s32.totalorder %s83, %s84
      %p98 = scmp.eq.s32.totalorder %s36, 1
      %p99 = por %p97, %p98
      %p101 = scmp.ne.s32.totalorder %s84, %s100
      %p102 = scmp.eq.s32.totalorder %s36, 0
      %p103 = por %p101, %p102
      %s104 = ssub.s32 %s37, %s49
      %p105 = scmp.eq.s32.totalorder %s104, 0
      %s107 = sadd.s32 %s106, 1
      %s108 = scalar_select %p105, %s106, %s107
      %p111 = pneg %p105
      %p112 = scmp.eq.s32.totalorder %s30, 1
      %p113 = por %p111, %p112
      %p114 = scmp.ne.s32.totalorder %s106, %s109
      %p115 = scmp.eq.s32.totalorder %s30, 0
      %p116 = por %p114, %p115
      %p117 = scmp.ne.s32.totalorder %s106, %s109
      %p118 = scmp.eq.s32.totalorder %s35, 1
      %p119 = por %p117, %p118
      %p120 = scmp.ne.s32.totalorder %s109, %s110
      %p121 = scmp.eq.s32.totalorder %s35, 0
      %p122 = por %p120, %p121
      %p123 = scmp.ne.s32.totalorder %s109, %s110
      %p124 = scmp.eq.s32.totalorder %s36, 1
      %p125 = por %p123, %p124
      %p127 = scmp.ne.s32.totalorder %s110, %s126
      %p128 = scmp.eq.s32.totalorder %s36, 0
      %p129 = por %p127, %p128
      %s131 = sadd.s32 %s130, 1
      %p134 = scmp.eq.s32.totalorder %s30, 1
      %p135 = scmp.ne.s32.totalorder %s130, %s132
      %p136 = scmp.eq.s32.totalorder %s30, 0
      %p137 = por %p135, %p136
      %p138 = scmp.ne.s32.totalorder %s130, %s132
      %p139 = scmp.eq.s32.totalorder %s35, 1
      %p140 = por %p138, %p139
      %p141 = scmp.ne.s32.totalorder %s132, %s133
      %p142 = scmp.eq.s32.totalorder %s35, 0
      %p143 = por %p141, %p142
      %p144 = scmp.ne.s32.totalorder %s132, %s133
      %p145 = scmp.eq.s32.totalorder %s36, 1
      %p146 = por %p144, %p145
      %p148 = scmp.ne.s32.totalorder %s133, %s147
      %p149 = scmp.eq.s32.totalorder %s36, 0
      %p150 = por %p148, %p149
      %s152 = sadd.s32 %s151, 1
      %p155 = scmp.eq.s32.totalorder %s30, 1
      %p156 = scmp.ne.s32.totalorder %s151, %s153
      %p157 = scmp.eq.s32.totalorder %s30, 0
      %p158 = por %p156, %p157
      %p159 = scmp.ne.s32.totalorder %s151, %s153
      %p160 = scmp.eq.s32.totalorder %s35, 1
      %p161 = por %p159, %p160
      %p162 = scmp.ne.s32.totalorder %s153, %s154
      %p163 = scmp.eq.s32.totalorder %s35, 0
      %p164 = por %p162, %p163
      %p165 = scmp.ne.s32.totalorder %s153, %s154
      %p166 = scmp.eq.s32.totalorder %s36, 1
      %p167 = por %p165, %p166
      %p169 = scmp.ne.s32.totalorder %s154, %s168
      %p170 = scmp.eq.s32.totalorder %s36, 0
      %p171 = por %p169, %p170
      %s173 = sadd.s32 %s172, 1
      %p176 = scmp.eq.s32.totalorder %s30, 1
      %p177 = scmp.ne.s32.totalorder %s172, %s174
      %p178 = scmp.eq.s32.totalorder %s30, 0
      %p179 = por %p177, %p178
      %p180 = scmp.ne.s32.totalorder %s172, %s174
      %p181 = scmp.eq.s32.totalorder %s35, 1
      %p182 = por %p180, %p181
      %p183 = scmp.ne.s32.totalorder %s174, %s175
      %p184 = scmp.eq.s32.totalorder %s35, 0
      %p185 = por %p183, %p184
      %p186 = scmp.ne.s32.totalorder %s174, %s175
      %p187 = scmp.eq.s32.totalorder %s36, 1
      %p188 = por %p186, %p187
      %p190 = scmp.ne.s32.totalorder %s175, %s189
      %p191 = scmp.eq.s32.totalorder %s36, 0
      %p192 = por %p190, %p191
      %s194 = sadd.s32 %s193, 1
      %p197 = scmp.eq.s32.totalorder %s30, 1
      %p198 = scmp.ne.s32.totalorder %s193, %s195
      %p199 = scmp.eq.s32.totalorder %s30, 0
      %p200 = por %p198, %p199
      %p201 = scmp.ne.s32.totalorder %s193, %s195
      %p202 = scmp.eq.s32.totalorder %s35, 1
      %p203 = por %p201, %p202
      %p204 = scmp.ne.s32.totalorder %s195, %s196
      %p205 = scmp.eq.s32.totalorder %s35, 0
      %p206 = por %p204, %p205
      %p207 = scmp.ne.s32.totalorder %s195, %s196
      %p208 = scmp.eq.s32.totalorder %s36, 1
      %p209 = por %p207, %p208
      %p211 = scmp.ne.s32.totalorder %s196, %s210
      %p212 = scmp.eq.s32.totalorder %s36, 0
      %p213 = por %p211, %p212
      %s215 = sadd.s32 %s214, 1
      %p218 = scmp.eq.s32.totalorder %s30, 1
      %p219 = scmp.ne.s32.totalorder %s214, %s216
      %p220 = scmp.eq.s32.totalorder %s30, 0
      %p221 = por %p219, %p220
      %p222 = scmp.ne.s32.totalorder %s214, %s216
      %p223 = scmp.eq.s32.totalorder %s35, 1
      %p224 = por %p222, %p223
      %p225 = scmp.ne.s32.totalorder %s216, %s217
      %p226 = scmp.eq.s32.totalorder %s35, 0
      %p227 = por %p225, %p226
      %p228 = scmp.ne.s32.totalorder %s216, %s217
      %p229 = scmp.eq.s32.totalorder %s36, 1
      %p230 = por %p228, %p229
      %p232 = scmp.ne.s32.totalorder %s217, %s231
      %p233 = scmp.eq.s32.totalorder %s36, 0
      %p234 = por %p232, %p233
      %s236 = sadd.s32 %s235, 1
      %p239 = scmp.eq.s32.totalorder %s30, 1
      %p240 = scmp.ne.s32.totalorder %s235, %s237
      %p241 = scmp.eq.s32.totalorder %s30, 0
      %p242 = por %p240, %p241
      %p243 = scmp.ne.s32.totalorder %s235, %s237
      %p244 = scmp.eq.s32.totalorder %s35, 1
      %p245 = por %p243, %p244
      %p246 = scmp.ne.s32.totalorder %s237, %s238
      %p247 = scmp.eq.s32.totalorder %s35, 0
      %p248 = por %p246, %p247
      %p249 = scmp.ne.s32.totalorder %s237, %s238
      %p250 = scmp.eq.s32.totalorder %s36, 1
      %p251 = por %p249, %p250
      %p253 = scmp.ne.s32.totalorder %s238, %s252
      %p254 = scmp.eq.s32.totalorder %s36, 0
      %p255 = por %p253, %p254
      %s257 = sadd.s32 %s256, 1
      %p260 = scmp.eq.s32.totalorder %s30, 1
      %p261 = scmp.ne.s32.totalorder %s256, %s258
      %p262 = scmp.eq.s32.totalorder %s30, 0
      %p263 = por %p261, %p262
      %p264 = scmp.ne.s32.totalorder %s256, %s258
      %p265 = scmp.eq.s32.totalorder %s35, 1
      %p266 = por %p264, %p265
      %p267 = scmp.ne.s32.totalorder %s258, %s259
      %p268 = scmp.eq.s32.totalorder %s35, 0
      %p269 = por %p267, %p268
      %p270 = scmp.ne.s32.totalorder %s258, %s259
      %p271 = scmp.eq.s32.totalorder %s36, 1
      %p272 = por %p270, %p271
      %p274 = scmp.ne.s32.totalorder %s259, %s273
      %p275 = scmp.eq.s32.totalorder %s36, 0
      %p276 = por %p274, %p275
      %s278 = sadd.s32 %s277, 1
      %p281 = scmp.eq.s32.totalorder %s30, 1
      %p282 = scmp.ne.s32.totalorder %s277, %s279
      %p283 = scmp.eq.s32.totalorder %s30, 0
      %p284 = por %p282, %p283
      %p285 = scmp.ne.s32.totalorder %s277, %s279
      %p286 = scmp.eq.s32.totalorder %s35, 1
      %p287 = por %p285, %p286
      %p288 = scmp.ne.s32.totalorder %s279, %s280
      %p289 = scmp.eq.s32.totalorder %s35, 0
      %p290 = por %p288, %p289
      %p291 = scmp.ne.s32.totalorder %s279, %s280
      %p292 = scmp.eq.s32.totalorder %s36, 1
      %p293 = por %p291, %p292
      %p295 = scmp.ne.s32.totalorder %s280, %s294
      %p296 = scmp.eq.s32.totalorder %s36, 0
      %p297 = por %p295, %p296
      %s299 = sadd.s32 %s298, 1
      %p302 = scmp.eq.s32.totalorder %s30, 1
      %p303 = scmp.ne.s32.totalorder %s298, %s300
      %p304 = scmp.eq.s32.totalorder %s30, 0
      %p305 = por %p303, %p304
      %p306 = scmp.ne.s32.totalorder %s298, %s300
      %p307 = scmp.eq.s32.totalorder %s35, 1
      %p308 = por %p306, %p307
      %p309 = scmp.ne.s32.totalorder %s300, %s301
      %p310 = scmp.eq.s32.totalorder %s35, 0
      %p311 = por %p309, %p310
      %p312 = scmp.ne.s32.totalorder %s300, %s301
      %p313 = scmp.eq.s32.totalorder %s36, 1
      %p314 = por %p312, %p313
      %p316 = scmp.ne.s32.totalorder %s301, %s315
      %p317 = scmp.eq.s32.totalorder %s36, 0
      %p318 = por %p316, %p317
      %s320 = sadd.s32 %s319, 1
      %p323 = scmp.eq.s32.totalorder %s30, 1
      %p324 = scmp.ne.s32.totalorder %s319, %s321
      %p325 = scmp.eq.s32.totalorder %s30, 0
      %p326 = por %p324, %p325
      %p327 = scmp.ne.s32.totalorder %s319, %s321
      %p328 = scmp.eq.s32.totalorder %s35, 1
      %p329 = por %p327, %p328
      %p330 = scmp.ne.s32.totalorder %s321, %s322
      %p331 = scmp.eq.s32.totalorder %s35, 0
      %p332 = por %p330, %p331
      %p333 = scmp.ne.s32.totalorder %s321, %s322
      %p334 = scmp.eq.s32.totalorder %s36, 1
      %p335 = por %p333, %p334
      %p337 = scmp.ne.s32.totalorder %s322, %s336
      %p338 = scmp.eq.s32.totalorder %s36, 0
      %p339 = por %p337, %p338
      %s340 = ssub.s32 %s37, %s49
      %s341 = ssub.s32 %s38, %s45
      %s342 = sor.u32 %s340, %s341
      %p343 = scmp.eq.s32.totalorder %s342, 0
      %s345 = sadd.s32 %s344, 1
      %s346 = scalar_select %p343, %s344, %s345
      %p349 = pneg %p343
      %p350 = scmp.eq.s32.totalorder %s30, 1
      %p351 = por %p349, %p350
      %p352 = scmp.ne.s32.totalorder %s344, %s347
      %p353 = scmp.eq.s32.totalorder %s30, 0
      %p354 = por %p352, %p353
      %p355 = scmp.ne.s32.totalorder %s344, %s347
      %p356 = scmp.eq.s32.totalorder %s35, 1
      %p357 = por %p355, %p356
      %p358 = scmp.ne.s32.totalorder %s347, %s348
      %p359 = scmp.eq.s32.totalorder %s35, 0
      %p360 = por %p358, %p359
      %p361 = scmp.ne.s32.totalorder %s347, %s348
      %p362 = scmp.eq.s32.totalorder %s36, 1
      %p363 = por %p361, %p362
      %p365 = scmp.ne.s32.totalorder %s348, %s364
      %p366 = scmp.eq.s32.totalorder %s36, 0
      %p367 = por %p365, %p366
      %p368 = scmp.le.s32.totalorder 1, %s30
      %p369 = scmp.lt.s32.totalorder %s30, 3
      %p370 = pnand %p368, %p369
      %p371 = pneg %p370
      // Predicated region
      $region9: #{tpu_custom_call.1} parent=5 // pred_check
        _
      $region10: #{tpu_custom_call.1} parent=5 // pred_check_branch
        %373 = sbr.rel (%p370) target = $region12
      $region11: #{tpu_custom_call.1} parent=5 // pred_region
        %s374 = ssub.s32 %s30, 1
        // Predicated region
        $region13: #{tpu_custom_call.1} parent=11 // pred_check
          %p375 = pneg %p143
        $region14: #{tpu_custom_call.1} parent=11 // pred_check_branch
          %377 = sbr.rel (%p375) target = $region16
        $region15: #{tpu_custom_call.1} parent=11 // pred_region
          _
        $region16: #{tpu_custom_call.1} parent=11 // pred_fallthru
          _
        // Predicated region
        $region17: #{tpu_custom_call.1} parent=11 // pred_check
          %p378 = pneg %p164
        $region18: #{tpu_custom_call.1} parent=11 // pred_check_branch
          %380 = sbr.rel (%p378) target = $region20
        $region19: #{tpu_custom_call.1} parent=11 // pred_region
          %382 = vsyncadd [#allocation9], 0
          %s384 = sshll.u32 %s4, 4
          %s385 = int_to_ptr.hbm [resolvable:$true] %s384
          %s386 = sshll.u32 [#allocation8], 4
          %s387 = int_to_ptr.vmem [resolvable:$true] %s386
          %389 = dma.hbm_to_vmem [thread:$0]  %s385, 16, %s387, [#allocation9]
        $region20: #{tpu_custom_call.1} parent=11 // pred_fallthru
          _
        // Predicated region
        $region21: #{tpu_custom_call.1} parent=11 // pred_check
          %p390 = pneg %p185
        $region22: #{tpu_custom_call.1} parent=11 // pred_check_branch
          %392 = sbr.rel (%p390) target = $region24
        $region23: #{tpu_custom_call.1} parent=11 // pred_region
          %394 = vsyncadd [#allocation9], 0
          %s395 = sshll.u32 %s5, 4
          %s396 = int_to_ptr.hbm [resolvable:$true] %s395
          %s397 = sshll.u32 [#allocation10], 4
          %s398 = int_to_ptr.vmem [resolvable:$true] %s397
          %403 = dma.hbm_to_vmem [thread:$0]  %s396, 1024, %s398, [#allocation9], 64, 64, 4
        $region24: #{tpu_custom_call.1} parent=11 // pred_fallthru
          _
        // Predicated region
        $region25: #{tpu_custom_call.1} parent=11 // pred_check
          %p404 = pneg %p206
        $region26: #{tpu_custom_call.1} parent=11 // pred_check_branch
          %406 = sbr.rel (%p404) target = $region28
        $region27: #{tpu_custom_call.1} parent=11 // pred_region
          _
        $region28: #{tpu_custom_call.1} parent=11 // pred_fallthru
          _
        // Predicated region
        $region29: #{tpu_custom_call.1} parent=11 // pred_check
          %p407 = pneg %p227
        $region30: #{tpu_custom_call.1} parent=11 // pred_check_branch
          %409 = sbr.rel (%p407) target = $region32
        $region31: #{tpu_custom_call.1} parent=11 // pred_region
          %411 = vsyncadd [#allocation12], 0
          %s412 = sshll.u32 %s7, 4
          %s413 = int_to_ptr.hbm [resolvable:$true] %s412
          %s414 = sshll.u32 [#allocation11], 4
          %s415 = int_to_ptr.vmem [resolvable:$true] %s414
          %420 = dma.hbm_to_vmem [thread:$0]  %s413, 2048, %s415, [#allocation12], 128, 128, 8
        $region32: #{tpu_custom_call.1} parent=11 // pred_fallthru
          _
        // Predicated region
        $region33: #{tpu_custom_call.1} parent=11 // pred_check
          %p421 = pneg %p248
        $region34: #{tpu_custom_call.1} parent=11 // pred_check_branch
          %423 = sbr.rel (%p421) target = $region36
        $region35: #{tpu_custom_call.1} parent=11 // pred_region
          _
        $region36: #{tpu_custom_call.1} parent=11 // pred_fallthru
          _
        // Predicated region
        $region37: #{tpu_custom_call.1} parent=11 // pred_check
          %p424 = pneg %p269
        $region38: #{tpu_custom_call.1} parent=11 // pred_check_branch
          %426 = sbr.rel (%p424) target = $region40
        $region39: #{tpu_custom_call.1} parent=11 // pred_region
          %428 = vsyncadd [#allocation12], 0
          %s429 = sshll.u32 %s9, 4
          %s430 = int_to_ptr.hbm [resolvable:$true] %s429
          %s431 = sshll.u32 [#allocation13], 4
          %s432 = int_to_ptr.vmem [resolvable:$true] %s431
          %437 = dma.hbm_to_vmem [thread:$0]  %s430, 1024, %s432, [#allocation12], 64, 64, 4
        $region40: #{tpu_custom_call.1} parent=11 // pred_fallthru
          _
        // Predicated region
        $region41: #{tpu_custom_call.1} parent=11 // pred_check
          %p438 = pneg %p290
        $region42: #{tpu_custom_call.1} parent=11 // pred_check_branch
          %440 = sbr.rel (%p438) target = $region44
        $region43: #{tpu_custom_call.1} parent=11 // pred_region
          _
        $region44: #{tpu_custom_call.1} parent=11 // pred_fallthru
          _
        // Predicated region
        $region45: #{tpu_custom_call.1} parent=11 // pred_check
          %p441 = pneg %p311
        $region46: #{tpu_custom_call.1} parent=11 // pred_check_branch
          %443 = sbr.rel (%p441) target = $region48
        $region47: #{tpu_custom_call.1} parent=11 // pred_region
          _
        $region48: #{tpu_custom_call.1} parent=11 // pred_fallthru
          _
        // Predicated region
        $region49: #{tpu_custom_call.1} parent=11 // pred_check
          %p444 = pneg %p332
        $region50: #{tpu_custom_call.1} parent=11 // pred_check_branch
          %446 = sbr.rel (%p444) target = $region52
        $region51: #{tpu_custom_call.1} parent=11 // pred_region
          _
        $region52: #{tpu_custom_call.1} parent=11 // pred_fallthru
          _
      $region12: #{tpu_custom_call.1} parent=5 // pred_fallthru
        _
      %p447 = scmp.lt.s32.totalorder %s30, 2
      // Predicated region
      $region53: #{tpu_custom_call.1} parent=5 // pred_check
        %p448 = pneg %p447
      $region54: #{tpu_custom_call.1} parent=5 // pred_check_branch
        %450 = sbr.rel (%p448) target = $region56
      $region55: #{tpu_custom_call.1} parent=5 // pred_region
        // Predicated region
        $region57: #{tpu_custom_call.1} parent=55 // pred_check
          %p451 = pneg %p64
        $region58: #{tpu_custom_call.1} parent=55 // pred_check_branch
          %453 = sbr.rel (%p451) target = $region60
        $region59: #{tpu_custom_call.1} parent=55 // pred_region
          %s454 = sand.u32 %s54, 1
          %s455 = scalar_lea.sflag [#allocation3], %s454
          %s456 = sand.u32 %s54, 1
          %s457 = smul.addr %s456, 8
          %s458 = scalar_lea.vmem [#allocation2], %s457
          %460 = vsyncadd %s455, 0
          %s461 = sadd.s32 %s38, %s37
          %s462 = smul.addr %s461, 8
          %s463 = scalar_lea.hbm %s0, %s462
          %s465 = sshll.u32 %s463, 4
          %s466 = int_to_ptr.hbm [resolvable:$true] %s465
          %s467 = sshll.u32 %s458, 4
          %s468 = int_to_ptr.vmem [resolvable:$true] %s467
          %470 = dma.hbm_to_vmem [thread:$0]  %s466, 128, %s468, %s455
        $region60: #{tpu_custom_call.1} parent=55 // pred_fallthru
          _
        // Predicated region
        $region61: #{tpu_custom_call.1} parent=55 // pred_check
          %p471 = pneg %p90
        $region62: #{tpu_custom_call.1} parent=55 // pred_check_branch
          %473 = sbr.rel (%p471) target = $region64
        $region63: #{tpu_custom_call.1} parent=55 // pred_region
          %s474 = sand.u32 %s30, 1
          %s475 = scalar_lea.sflag [#allocation6], %s474
          %s476 = sand.u32 %s80, 1
          %s477 = smul.addr %s476, 8
          %s478 = scalar_lea.vmem [#allocation5], %s477
          %480 = vsyncadd %s475, 0
          %s481 = smul.addr %s37, 8
          %s482 = scalar_lea.hbm %s1, %s481
          %s484 = sshll.u32 %s482, 4
          %s485 = int_to_ptr.hbm [resolvable:$true] %s484
          %s486 = sshll.u32 %s478, 4
          %s487 = int_to_ptr.vmem [resolvable:$true] %s486
          %489 = dma.hbm_to_vmem [thread:$0]  %s485, 128, %s487, %s475
        $region64: #{tpu_custom_call.1} parent=55 // pred_fallthru
          _
        // Predicated region
        $region65: #{tpu_custom_call.1} parent=55 // pred_check
          %p490 = pneg %p116
        $region66: #{tpu_custom_call.1} parent=55 // pred_check_branch
          %492 = sbr.rel (%p490) target = $region68
        $region67: #{tpu_custom_call.1} parent=55 // pred_region
          %s493 = sand.u32 %s30, 1
          %s494 = scalar_lea.sflag [#allocation6], %s493
          %s495 = sand.u32 %s106, 1
          %s496 = scalar_lea.vmem [#allocation7], %s495
          %498 = vsyncadd %s494, 0
          %s499 = scalar_lea.hbm %s2, %s37
          %s501 = sshll.u32 %s499, 4
          %s502 = int_to_ptr.hbm [resolvable:$true] %s501
          %s503 = sshll.u32 %s496, 4
          %s504 = int_to_ptr.vmem [resolvable:$true] %s503
          %506 = dma.hbm_to_vmem [thread:$0]  %s502, 16, %s504, %s494
        $region68: #{tpu_custom_call.1} parent=55 // pred_fallthru
          _
      $region56: #{tpu_custom_call.1} parent=5 // pred_fallthru
        _
      %p507 = scmp.le.s32.totalorder 1, %s30
      %p508 = scmp.lt.s32.totalorder %s30, 3
      %p509 = pnand %p507, %p508
      %p510 = pneg %p509
      // Predicated region
      $region69: #{tpu_custom_call.1} parent=5 // pred_check
        _
      $region70: #{tpu_custom_call.1} parent=5 // pred_check_branch
        %512 = sbr.rel (%p509) target = $region72
      $region71: #{tpu_custom_call.1} parent=5 // pred_region
        %s513 = ssub.s32 %s30, 1
        %s514 = sand.u32 %s57, 1
        %s515 = scalar_lea.sflag [#allocation3], %s514
        %s516 = sand.u32 %s57, 1
        %s517 = smul.addr %s516, 8
        %s518 = scalar_lea.vmem [#allocation2], %s517
        // Predicated region
        $region73: #{tpu_custom_call.1} parent=71 // pred_check
          %p519 = pneg %p70
        $region74: #{tpu_custom_call.1} parent=71 // pred_check_branch
          %521 = sbr.rel (%p519) target = $region76
        $region75: #{tpu_custom_call.1} parent=71 // pred_region
          %523 = dma.done %s515, 128
        $region76: #{tpu_custom_call.1} parent=71 // pred_fallthru
          _
        %s524 = sand.u32 %s35, 1
        %s525 = scalar_lea.sflag [#allocation6], %s524
        %s526 = sand.u32 %s83, 1
        %s527 = smul.addr %s526, 8
        %s528 = scalar_lea.vmem [#allocation5], %s527
        // Predicated region
        $region77: #{tpu_custom_call.1} parent=71 // pred_check
          %p529 = pneg %p96
        $region78: #{tpu_custom_call.1} parent=71 // pred_check_branch
          %531 = sbr.rel (%p529) target = $region80
        $region79: #{tpu_custom_call.1} parent=71 // pred_region
          %533 = dma.done %s525, 128
        $region80: #{tpu_custom_call.1} parent=71 // pred_fallthru
          _
        %s534 = sand.u32 %s35, 1
        %s535 = scalar_lea.sflag [#allocation6], %s534
        %s536 = sand.u32 %s109, 1
        %s537 = scalar_lea.vmem [#allocation7], %s536
        // Predicated region
        $region81: #{tpu_custom_call.1} parent=71 // pred_check
          %p538 = pneg %p122
        $region82: #{tpu_custom_call.1} parent=71 // pred_check_branch
          %540 = sbr.rel (%p538) target = $region84
        $region83: #{tpu_custom_call.1} parent=71 // pred_region
          %542 = dma.done %s535, 16
        $region84: #{tpu_custom_call.1} parent=71 // pred_fallthru
          _
        // Predicated region
        $region85: #{tpu_custom_call.1} parent=71 // pred_check
          %p543 = pneg %p164
        $region86: #{tpu_custom_call.1} parent=71 // pred_check_branch
          %545 = sbr.rel (%p543) target = $region88
        $region87: #{tpu_custom_call.1} parent=71 // pred_region
          %547 = dma.done [#allocation9], 16
        $region88: #{tpu_custom_call.1} parent=71 // pred_fallthru
          _
        // Predicated region
        $region89: #{tpu_custom_call.1} parent=71 // pred_check
          %p548 = pneg %p185
        $region90: #{tpu_custom_call.1} parent=71 // pred_check_branch
          %550 = sbr.rel (%p548) target = $region92
        $region91: #{tpu_custom_call.1} parent=71 // pred_region
          %552 = dma.done [#allocation9], 1024
        $region92: #{tpu_custom_call.1} parent=71 // pred_fallthru
          _
        // Predicated region
        $region93: #{tpu_custom_call.1} parent=71 // pred_check
          %p553 = pneg %p227
        $region94: #{tpu_custom_call.1} parent=71 // pred_check_branch
          %555 = sbr.rel (%p553) target = $region96
        $region95: #{tpu_custom_call.1} parent=71 // pred_region
          %557 = dma.done [#allocation12], 2048
        $region96: #{tpu_custom_call.1} parent=71 // pred_fallthru
          _
        // Predicated region
        $region97: #{tpu_custom_call.1} parent=71 // pred_check
          %p558 = pneg %p269
        $region98: #{tpu_custom_call.1} parent=71 // pred_check_branch
          %560 = sbr.rel (%p558) target = $region100
        $region99: #{tpu_custom_call.1} parent=71 // pred_region
          %562 = dma.done [#allocation12], 1024
        $region100: #{tpu_custom_call.1} parent=71 // pred_fallthru
          _
        %s563 = sand.u32 %s57, 1
        %s564 = scalar_lea.sflag [#allocation3], %s563
        %s565 = sand.u32 %s57, 1
        %s566 = smul.addr %s565, 8
        %s567 = scalar_lea.vmem [#allocation2], %s566
        %p568 = pneg %p70
        %p569 = pneg %p67
        %s570 = sand.u32 %s35, 1
        %s571 = scalar_lea.sflag [#allocation6], %s570
        %s572 = sand.u32 %s83, 1
        %s573 = smul.addr %s572, 8
        %s574 = scalar_lea.vmem [#allocation5], %s573
        %p575 = pneg %p96
        %p576 = pneg %p93
        %s577 = sand.u32 %s35, 1
        %s578 = scalar_lea.sflag [#allocation6], %s577
        %s579 = sand.u32 %s109, 1
        %s580 = scalar_lea.vmem [#allocation7], %s579
        %p581 = pneg %p122
        %p582 = pneg %p119
        %p583 = pneg %p143
        %p584 = pneg %p140
        %p585 = pneg %p164
        %p586 = pneg %p161
        %p587 = pneg %p185
        %p588 = pneg %p182
        %p589 = pneg %p206
        %p590 = pneg %p203
        %p591 = pneg %p227
        %p592 = pneg %p224
        %p593 = pneg %p248
        %p594 = pneg %p245
        %p595 = pneg %p269
        %p596 = pneg %p266
        %p597 = pneg %p290
        %p598 = pneg %p287
        %p599 = pneg %p311
        %p600 = pneg %p308
        %p601 = pneg %p332
        %p602 = pneg %p329
        %p603 = pneg %p360
        %p604 = pneg %p357
        %s605 = sand.u32 %s347, 1
        %s606 = scalar_lea.sflag [#allocation4], %s605
        %s607 = sand.u32 %s347, 1
        %s608 = smul.addr %s607, 8
        %s609 = scalar_lea.vmem [#allocation14], %s608
        %v611 = vld [vmem:[%s518] sm:$0xff]
        %v612 = vld [vmem:[%s528] sm:$0xff]
        %v613 = vld [vmem:[%s537] sm:$0x1]
        %v614 = vld [vmem:[%s3] sm:$0x1]
        %v615 = vld [vmem:[#allocation8] sm:$0x1]
        %616 = vadd.xlane.f32.xlu0 %v611
        %v617 = vpop.xlane.xlu0 %616
        %v618 = vrcp.pop 128.0
        %v619 = vmul.f32 128.0, %v618
        %v620 = vsub.f32 1.0, %v619
        %v621 = vmul.f32 %v618, %v620
        %v622 = vadd.f32 %v618, %v621
        %vm623 = vweird.f32 %v618
        %v624 = vsel %vm623, %v618, %v622
        %v625 = vmul.f32 %v617, %v624
        %v626 = vsub.f32 %v611, %v625
        %v627 = vmul.f32 %v626, %v626
        %628 = vadd.xlane.f32.xlu0 %v627
        %v629 = vpop.xlane.xlu0 %628
        %v630 = vmul.f32 %v629, %v624
        %v631 = vadd.f32 %v630, 1e-05
        %v632 = vrsqrt.pop %v631
        %v633 = vmul.f32 %v632, %v631
        %v634 = vmul.f32 %v633, %v632
        %v635 = vmul.f32 0.5, %v634
        %v636 = vsub.f32 1.5, %v635
        %v637 = vmul.f32 %v632, %v636
        %vm638 = vweird.f32 %v631
        %vm639 = vweird.f32 %v632
        %vm640 = vmor %vm638, %vm639
        %v641 = vsel %vm640, %v632, %v637
        %v642 = vmul.f32 %v626, %v641
        %v644 = vperm.slane %v614, 0
        %v646 = vmul.f32 %v642, %v644
        %v648 = vperm.slane %v615, 0
        %v650 = vadd.f32 %v646, %v648
        %651 = vadd.xlane.f32.xlu0 %v612
        %v652 = vpop.xlane.xlu0 %651
        %v653 = vmul.f32 %v652, %v624
        %v654 = vsub.f32 %v612, %v653
        %v655 = vmul.f32 %v654, %v654
        %656 = vadd.xlane.f32.xlu0 %v655
        %v657 = vpop.xlane.xlu0 %656
        %v658 = vmul.f32 %v657, %v624
        %v659 = vadd.f32 %v658, 1e-05
        %v660 = vrsqrt.pop %v659
        %v661 = vmul.f32 %v660, %v659
        %v662 = vmul.f32 %v661, %v660
        %v663 = vmul.f32 0.5, %v662
        %v664 = vsub.f32 1.5, %v663
        %v665 = vmul.f32 %v660, %v664
        %vm666 = vweird.f32 %v659
        %vm667 = vweird.f32 %v660
        %vm668 = vmor %vm666, %vm667
        %v669 = vsel %vm668, %v660, %v665
        %v670 = vmul.f32 %v654, %v669
        %v671 = vmul.f32 %v670, %v644
        %v672 = vadd.f32 %v671, %v648
        %v673 = vpack.c.bf16 %v650, %v650
        %v674 = vld [vmem:[#allocation10] sm:$0xf]
        %v675 = vld [vmem:[#allocation10 + $0x4] sm:$0xf]
        %v676 = vld [vmem:[#allocation10 + $0x8] sm:$0xf]
        %v677 = vld [vmem:[#allocation10 + $0xc] sm:$0xf]
        %v678 = vld [vmem:[#allocation10 + $0x10] sm:$0xf]
        %v679 = vld [vmem:[#allocation10 + $0x14] sm:$0xf]
        %v680 = vld [vmem:[#allocation10 + $0x18] sm:$0xf]
        %v681 = vld [vmem:[#allocation10 + $0x1c] sm:$0xf]
        %v682 = vld [vmem:[#allocation10 + $0x20] sm:$0xf]
        %v683 = vld [vmem:[#allocation10 + $0x24] sm:$0xf]
        %v684 = vld [vmem:[#allocation10 + $0x28] sm:$0xf]
        %v685 = vld [vmem:[#allocation10 + $0x2c] sm:$0xf]
        %v686 = vld [vmem:[#allocation10 + $0x30] sm:$0xf]
        %v687 = vld [vmem:[#allocation10 + $0x34] sm:$0xf]
        %v688 = vld [vmem:[#allocation10 + $0x38] sm:$0xf]
        %v689 = vld [vmem:[#allocation10 + $0x3c] sm:$0xf]
        %v690 = vld [vmem:[%s6] sm:$0x1]
        %v692 = vperm.slane %v690, 0
        %v710 = vunpack.c.l.b16 %v674
        %v711 = vunpack.c.l.b16 %v675
        %v712 = vunpack.c.l.b16 %v676
        %v713 = vunpack.c.l.b16 %v677
        %v714 = vunpack.c.l.b16 %v678
        %v715 = vunpack.c.l.b16 %v679
        %v716 = vunpack.c.l.b16 %v680
        %v717 = vunpack.c.l.b16 %v681
        %v718 = vunpack.c.l.b16 %v682
        %v719 = vunpack.c.l.b16 %v683
        %v720 = vunpack.c.l.b16 %v684
        %v721 = vunpack.c.l.b16 %v685
        %v722 = vunpack.c.l.b16 %v686
        %v723 = vunpack.c.l.b16 %v687
        %v724 = vunpack.c.l.b16 %v688
        %v725 = vunpack.c.l.b16 %v689
        %v726 = vpack.c.b16 %v711, %v710
        %v727 = vpack.c.b16 %v713, %v712
        %v728 = vpack.c.b16 %v715, %v714
        %v729 = vpack.c.b16 %v717, %v716
        %v730 = vpack.c.b16 %v719, %v718
        %v731 = vpack.c.b16 %v721, %v720
        %v732 = vpack.c.b16 %v723, %v722
        %v733 = vpack.c.b16 %v725, %v724
        %742 = vmatpush.bf16.msra.mxu0 %v733
        %743 = vmatpush.bf16.msra.mxu0 %v732
        %744 = vmatpush.bf16.msra.mxu0 %v731
        %745 = vmatpush.bf16.msra.mxu0 %v730
        %746 = vmatpush.bf16.msra.mxu0 %v729
        %747 = vmatpush.bf16.msra.mxu0 %v728
        %748 = vmatpush.bf16.msra.mxu0 %v727
        %749 = vmatpush.bf16.msra.mxu0 %v726
        %750 = vmatmul.bf16.gmra.mxu0 %v673
        %v751 = vpop.f32.mrf.mxu0
        %v752 = vadd.f32 %v692, %v751
        %v753 = vpop.f32.mrf.mxu0
        %754 = vdwg.mxu0
        %v755 = vpack.c.bf16 %v672, %v672
        %v756 = vld [vmem:[#allocation11] sm:$0xff]
        %v757 = vld [vmem:[#allocation11 + $0x8] sm:$0xff]
        %v758 = vld [vmem:[#allocation11 + $0x10] sm:$0xff]
        %v759 = vld [vmem:[#allocation11 + $0x18] sm:$0xff]
        %v760 = vld [vmem:[#allocation11 + $0x20] sm:$0xff]
        %v761 = vld [vmem:[#allocation11 + $0x28] sm:$0xff]
        %v762 = vld [vmem:[#allocation11 + $0x30] sm:$0xff]
        %v763 = vld [vmem:[#allocation11 + $0x38] sm:$0xff]
        %v764 = vld [vmem:[#allocation11 + $0x40] sm:$0xff]
        %v765 = vld [vmem:[#allocation11 + $0x48] sm:$0xff]
        %v766 = vld [vmem:[#allocation11 + $0x50] sm:$0xff]
        %v767 = vld [vmem:[#allocation11 + $0x58] sm:$0xff]
        %v768 = vld [vmem:[#allocation11 + $0x60] sm:$0xff]
        %v769 = vld [vmem:[#allocation11 + $0x68] sm:$0xff]
        %v770 = vld [vmem:[#allocation11 + $0x70] sm:$0xff]
        %v771 = vld [vmem:[#allocation11 + $0x78] sm:$0xff]
        %v772 = vld [vmem:[%s8] sm:$0x3]
        %v774 = vperm.slane %v772, 0
        %v775 = vperm.slane %v772, 1
        %v794 = vunpack.c.l.b16 %v756
        %v795 = vunpack.c.h.b16 %v756
        %v796 = vunpack.c.l.b16 %v757
        %v797 = vunpack.c.h.b16 %v757
        %v798 = vunpack.c.l.b16 %v758
        %v799 = vunpack.c.h.b16 %v758
        %v800 = vunpack.c.l.b16 %v759
        %v801 = vunpack.c.h.b16 %v759
        %v802 = vunpack.c.l.b16 %v760
        %v803 = vunpack.c.h.b16 %v760
        %v804 = vunpack.c.l.b16 %v761
        %v805 = vunpack.c.h.b16 %v761
        %v806 = vunpack.c.l.b16 %v762
        %v807 = vunpack.c.h.b16 %v762
        %v808 = vunpack.c.l.b16 %v763
        %v809 = vunpack.c.h.b16 %v763
        %v810 = vunpack.c.l.b16 %v764
        %v811 = vunpack.c.h.b16 %v764
        %v812 = vunpack.c.l.b16 %v765
        %v813 = vunpack.c.h.b16 %v765
        %v814 = vunpack.c.l.b16 %v766
        %v815 = vunpack.c.h.b16 %v766
        %v816 = vunpack.c.l.b16 %v767
        %v817 = vunpack.c.h.b16 %v767
        %v818 = vunpack.c.l.b16 %v768
        %v819 = vunpack.c.h.b16 %v768
        %v820 = vunpack.c.l.b16 %v769
        %v821 = vunpack.c.h.b16 %v769
        %v822 = vunpack.c.l.b16 %v770
        %v823 = vunpack.c.h.b16 %v770
        %v824 = vunpack.c.l.b16 %v771
        %v825 = vunpack.c.h.b16 %v771
        %v826 = vpack.c.b16 %v796, %v794
        %v827 = vpack.c.b16 %v797, %v795
        %v828 = vpack.c.b16 %v800, %v798
        %v829 = vpack.c.b16 %v801, %v799
        %v830 = vpack.c.b16 %v804, %v802
        %v831 = vpack.c.b16 %v805, %v803
        %v832 = vpack.c.b16 %v808, %v806
        %v833 = vpack.c.b16 %v809, %v807
        %v834 = vpack.c.b16 %v812, %v810
        %v835 = vpack.c.b16 %v813, %v811
        %v836 = vpack.c.b16 %v816, %v814
        %v837 = vpack.c.b16 %v817, %v815
        %v838 = vpack.c.b16 %v820, %v818
        %v839 = vpack.c.b16 %v821, %v819
        %v840 = vpack.c.b16 %v824, %v822
        %v841 = vpack.c.b16 %v825, %v823
        %858 = vmatpush.bf16.msra.mxu0 %v840
        %859 = vmatpush.bf16.msra.mxu0 %v838
        %860 = vmatpush.bf16.msra.mxu0 %v836
        %861 = vmatpush.bf16.msra.mxu0 %v834
        %862 = vmatpush.bf16.msra.mxu0 %v832
        %863 = vmatpush.bf16.msra.mxu0 %v830
        %864 = vmatpush.bf16.msra.mxu0 %v828
        %865 = vmatpush.bf16.msra.mxu0 %v826
        %866 = vmatmul.bf16.gmra.mxu0 %v755
        %v867 = vpop.f32.mrf.mxu0
        %v868 = vadd.f32 %v774, %v867
        %v869 = vpop.f32.mrf.mxu0
        %870 = vdwg.mxu0
        %871 = vmatpush.bf16.msra.mxu0 %v841
        %872 = vmatpush.bf16.msra.mxu0 %v839
        %873 = vmatpush.bf16.msra.mxu0 %v837
        %874 = vmatpush.bf16.msra.mxu0 %v835
        %875 = vmatpush.bf16.msra.mxu0 %v833
        %876 = vmatpush.bf16.msra.mxu0 %v831
        %877 = vmatpush.bf16.msra.mxu0 %v829
        %878 = vmatpush.bf16.msra.mxu0 %v827
        %879 = vmatmul.bf16.gmra.mxu0 %v755
        %v880 = vpop.f32.mrf.mxu0
        %v881 = vadd.f32 %v775, %v880
        %v882 = vpop.f32.mrf.mxu0
        %883 = vdwg.mxu0
        %v884 = vmul.f32 %v613, 1e+09
        %v885 = vpack.c.bf16 %v752, %v752
        %v886 = vpack.c.bf16 %v868, %v868
        %v887 = vpack.c.bf16 %v881, %v881
        %vm888 = vcmask 261120
        %v890 = vsel %vm888, %v885, 0
        %v893 = vsel %vm888, %v886, 0
        %895 = vmatpush.bf16.xpose.msra.mxu0 0
        %896 = vmatpush.bf16.xpose.msra.mxu0 0
        %897 = vmatpush.bf16.xpose.msra.mxu0 0
        %898 = vmatpush.bf16.xpose.msra.mxu0 0
        %899 = vmatpush.bf16.xpose.msra.mxu0 0
        %900 = vmatpush.bf16.xpose.msra.mxu0 0
        %901 = vmatpush.bf16.xpose.msra.mxu0 0
        %902 = vmatpush.bf16.xpose.msra.mxu0 %v893
        %903 = vmatmul.bf16.gmra.mxu0 %v890
        %v904 = vpop.f32.mrf.mxu0
        %v905 = vadd.f32 0.0, %v904
        %v906 = vpop.f32.mrf.mxu0
        %907 = vdwg.mxu0
        %v908 = vmul.f32 %v905, 0.17677669
        %v910 = vperm.slane %v884, 0
        %v912 = vsub.f32 %v908, %v910
        %vm913 = vcmask 64512
        %v914 = vsel %vm913, %v912, -inf
        %915 = vmax.xlane.f32.xlu0 %v914
        %v916 = vpop.xlane.xlu0 %915
        %v917 = vsub.f32 %v912, %v916
        %v918 = vmul.f32 %v917, 1.442695
        %v919 = vpow.pop %v918
        %v920 = vsel %vm913, %v919, 0.0
        %921 = vadd.xlane.f32.xlu0 %v920
        %v922 = vpop.xlane.xlu0 %921
        %v923 = vrcp.pop %v922
        %v924 = vmul.f32 %v919, %v923
        %v925 = vpack.c.bf16 %v924, %v924
        %v927 = vsel %vm913, %v925, 0
        %vm929 = vcmask 1043456
        %v931 = vsel %vm929, %v887, 0
        %933 = vmatpush.bf16.msra.mxu0 0
        %934 = vmatpush.bf16.msra.mxu0 0
        %935 = vmatpush.bf16.msra.mxu0 0
        %936 = vmatpush.bf16.msra.mxu0 0
        %937 = vmatpush.bf16.msra.mxu0 0
        %938 = vmatpush.bf16.msra.mxu0 0
        %939 = vmatpush.bf16.msra.mxu0 0
        %940 = vmatpush.bf16.msra.mxu0 %v931
        %941 = vmatmul.bf16.gmra.mxu0 %v927
        %v942 = vpop.f32.mrf.mxu0
        %v943 = vadd.f32 0.0, %v942
        %v944 = vpop.f32.mrf.mxu0
        %945 = vdwg.mxu0
        %947 = vrot.lane.b32.xlu0 %v885, 96
        %v948 = vpop.permute.xlu0 %947
        %950 = vrot.lane.b32.xlu0 %v886, 96
        %v951 = vpop.permute.xlu0 %950
        %v953 = vsel %vm888, %v948, 0
        %v956 = vsel %vm888, %v951, 0
        %958 = vmatpush.bf16.xpose.msra.mxu0 0
        %959 = vmatpush.bf16.xpose.msra.mxu0 0
        %960 = vmatpush.bf16.xpose.msra.mxu0 0
        %961 = vmatpush.bf16.xpose.msra.mxu0 0
        %962 = vmatpush.bf16.xpose.msra.mxu0 0
        %963 = vmatpush.bf16.xpose.msra.mxu0 0
        %964 = vmatpush.bf16.xpose.msra.mxu0 0
        %965 = vmatpush.bf16.xpose.msra.mxu0 %v956
        %966 = vmatmul.bf16.gmra.mxu0 %v953
        %v967 = vpop.f32.mrf.mxu0
        %v968 = vadd.f32 0.0, %v967
        %v969 = vpop.f32.mrf.mxu0
        %970 = vdwg.mxu0
        %v971 = vmul.f32 %v968, 0.17677669
        %v972 = vsub.f32 %v971, %v910
        %v973 = vsel %vm913, %v972, -inf
        %974 = vmax.xlane.f32.xlu0 %v973
        %v975 = vpop.xlane.xlu0 %974
        %v976 = vsub.f32 %v972, %v975
        %v977 = vmul.f32 %v976, 1.442695
        %v978 = vpow.pop %v977
        %v979 = vsel %vm913, %v978, 0.0
        %980 = vadd.xlane.f32.xlu0 %v979
        %v981 = vpop.xlane.xlu0 %980
        %v982 = vrcp.pop %v981
        %v983 = vmul.f32 %v978, %v982
        %v984 = vpack.c.bf16 %v983, %v983
        %986 = vrot.lane.b32.xlu0 %v887, 96
        %v987 = vpop.permute.xlu0 %986
        %v989 = vsel %vm913, %v984, 0
        %v992 = vsel %vm929, %v987, 0
        %994 = vmatpush.bf16.msra.mxu0 0
        %995 = vmatpush.bf16.msra.mxu0 0
        %996 = vmatpush.bf16.msra.mxu0 0
        %997 = vmatpush.bf16.msra.mxu0 0
        %998 = vmatpush.bf16.msra.mxu0 0
        %999 = vmatpush.bf16.msra.mxu0 0
        %1000 = vmatpush.bf16.msra.mxu0 0
        %1001 = vmatpush.bf16.msra.mxu0 %v992
        %1002 = vmatmul.bf16.gmra.mxu0 %v989
        %v1003 = vpop.f32.mrf.mxu0
        %v1004 = vadd.f32 0.0, %v1003
        %v1005 = vpop.f32.mrf.mxu0
        %1006 = vdwg.mxu0
        %1007 = vrot.lane.b32.xlu0 %v885, 64
        %v1008 = vpop.permute.xlu0 %1007
        %1009 = vrot.lane.b32.xlu0 %v886, 64
        %v1010 = vpop.permute.xlu0 %1009
        %v1012 = vsel %vm888, %v1008, 0
        %v1015 = vsel %vm888, %v1010, 0
        %1017 = vmatpush.bf16.xpose.msra.mxu0 0
        %1018 = vmatpush.bf16.xpose.msra.mxu0 0
        %1019 = vmatpush.bf16.xpose.msra.mxu0 0
        %1020 = vmatpush.bf16.xpose.msra.mxu0 0
        %1021 = vmatpush.bf16.xpose.msra.mxu0 0
        %1022 = vmatpush.bf16.xpose.msra.mxu0 0
        %1023 = vmatpush.bf16.xpose.msra.mxu0 0
        %1024 = vmatpush.bf16.xpose.msra.mxu0 %v1015
        %1025 = vmatmul.bf16.gmra.mxu0 %v1012
        %v1026 = vpop.f32.mrf.mxu0
        %v1027 = vadd.f32 0.0, %v1026
        %v1028 = vpop.f32.mrf.mxu0
        %1029 = vdwg.mxu0
        %v1030 = vmul.f32 %v1027, 0.17677669
        %v1031 = vsub.f32 %v1030, %v910
        %v1032 = vsel %vm913, %v1031, -inf
        %1033 = vmax.xlane.f32.xlu0 %v1032
        %v1034 = vpop.xlane.xlu0 %1033
        %v1035 = vsub.f32 %v1031, %v1034
        %v1036 = vmul.f32 %v1035, 1.442695
        %v1037 = vpow.pop %v1036
        %v1038 = vsel %vm913, %v1037, 0.0
        %1039 = vadd.xlane.f32.xlu0 %v1038
        %v1040 = vpop.xlane.xlu0 %1039
        %v1041 = vrcp.pop %v1040
        %v1042 = vmul.f32 %v1037, %v1041
        %v1043 = vpack.c.bf16 %v1042, %v1042
        %1044 = vrot.lane.b32.xlu0 %v887, 64
        %v1045 = vpop.permute.xlu0 %1044
        %v1047 = vsel %vm913, %v1043, 0
        %v1050 = vsel %vm929, %v1045, 0
        %1052 = vmatpush.bf16.msra.mxu0 0
        %1053 = vmatpush.bf16.msra.mxu0 0
        %1054 = vmatpush.bf16.msra.mxu0 0
        %1055 = vmatpush.bf16.msra.mxu0 0
        %1056 = vmatpush.bf16.msra.mxu0 0
        %1057 = vmatpush.bf16.msra.mxu0 0
        %1058 = vmatpush.bf16.msra.mxu0 0
        %1059 = vmatpush.bf16.msra.mxu0 %v1050
        %1060 = vmatmul.bf16.gmra.mxu0 %v1047
        %v1061 = vpop.f32.mrf.mxu0
        %v1062 = vadd.f32 0.0, %v1061
        %v1063 = vpop.f32.mrf.mxu0
        %1064 = vdwg.mxu0
        %1065 = vrot.lane.b32.xlu0 %v885, 32
        %v1066 = vpop.permute.xlu0 %1065
        %1067 = vrot.lane.b32.xlu0 %v886, 32
        %v1068 = vpop.permute.xlu0 %1067
        %v1070 = vsel %vm888, %v1066, 0
        %v1073 = vsel %vm888, %v1068, 0
        %1075 = vmatpush.bf16.xpose.msra.mxu0 0
        %1076 = vmatpush.bf16.xpose.msra.mxu0 0
        %1077 = vmatpush.bf16.xpose.msra.mxu0 0
        %1078 = vmatpush.bf16.xpose.msra.mxu0 0
        %1079 = vmatpush.bf16.xpose.msra.mxu0 0
        %1080 = vmatpush.bf16.xpose.msra.mxu0 0
        %1081 = vmatpush.bf16.xpose.msra.mxu0 0
        %1082 = vmatpush.bf16.xpose.msra.mxu0 %v1073
        %1083 = vmatmul.bf16.gmra.mxu0 %v1070
        %v1084 = vpop.f32.mrf.mxu0
        %v1085 = vadd.f32 0.0, %v1084
        %v1086 = vpop.f32.mrf.mxu0
        %1087 = vdwg.mxu0
        %v1088 = vmul.f32 %v1085, 0.17677669
        %v1089 = vsub.f32 %v1088, %v910
        %v1090 = vsel %vm913, %v1089, -inf
        %1091 = vmax.xlane.f32.xlu0 %v1090
        %v1092 = vpop.xlane.xlu0 %1091
        %v1093 = vsub.f32 %v1089, %v1092
        %v1094 = vmul.f32 %v1093, 1.442695
        %v1095 = vpow.pop %v1094
        %v1096 = vsel %vm913, %v1095, 0.0
        %1097 = vadd.xlane.f32.xlu0 %v1096
        %v1098 = vpop.xlane.xlu0 %1097
        %v1099 = vrcp.pop %v1098
        %v1100 = vmul.f32 %v1095, %v1099
        %v1101 = vpack.c.bf16 %v1100, %v1100
        %1102 = vrot.lane.b32.xlu0 %v887, 32
        %v1103 = vpop.permute.xlu0 %1102
        %v1105 = vsel %vm913, %v1101, 0
        %v1108 = vsel %vm929, %v1103, 0
        %1110 = vmatpush.bf16.msra.mxu0 0
        %1111 = vmatpush.bf16.msra.mxu0 0
        %1112 = vmatpush.bf16.msra.mxu0 0
        %1113 = vmatpush.bf16.msra.mxu0 0
        %1114 = vmatpush.bf16.msra.mxu0 0
        %1115 = vmatpush.bf16.msra.mxu0 0
        %1116 = vmatpush.bf16.msra.mxu0 0
        %1117 = vmatpush.bf16.msra.mxu0 %v1108
        %1118 = vmatmul.bf16.gmra.mxu0 %v1105
        %v1119 = vpop.f32.mrf.mxu0
        %v1120 = vadd.f32 0.0, %v1119
        %v1121 = vpop.f32.mrf.mxu0
        %1122 = vdwg.mxu0
        %1124 = vrot.lane.b32.xlu0 %v1004, 32
        %v1125 = vpop.permute.xlu0 %1124
        %1128 = vrot.lane.b32.xlu0 %v1062, 64
        %v1129 = vpop.permute.xlu0 %1128
        %1132 = vrot.lane.b32.xlu0 %v1120, 96
        %v1133 = vpop.permute.xlu0 %1132
        %v1135 = vsel %vm888, %v943, %v1125
        %vm1136 = vcmask 523264
        %v1137 = vsel %vm1136, %v1135, %v1129
        %vm1138 = vcmask 785408
        %v1139 = vsel %vm1138, %v1137, %v1133
        %v1140 = vpack.c.bf16 %v1139, %v1139
        %v1141 = vld [vmem:[#allocation13] sm:$0xf]
        %v1142 = vld [vmem:[#allocation13 + $0x4] sm:$0xf]
        %v1143 = vld [vmem:[#allocation13 + $0x8] sm:$0xf]
        %v1144 = vld [vmem:[#allocation13 + $0xc] sm:$0xf]
        %v1145 = vld [vmem:[#allocation13 + $0x10] sm:$0xf]
        %v1146 = vld [vmem:[#allocation13 + $0x14] sm:$0xf]
        %v1147 = vld [vmem:[#allocation13 + $0x18] sm:$0xf]
        %v1148 = vld [vmem:[#allocation13 + $0x1c] sm:$0xf]
        %v1149 = vld [vmem:[#allocation13 + $0x20] sm:$0xf]
        %v1150 = vld [vmem:[#allocation13 + $0x24] sm:$0xf]
        %v1151 = vld [vmem:[#allocation13 + $0x28] sm:$0xf]
        %v1152 = vld [vmem:[#allocation13 + $0x2c] sm:$0xf]
        %v1153 = vld [vmem:[#allocation13 + $0x30] sm:$0xf]
        %v1154 = vld [vmem:[#allocation13 + $0x34] sm:$0xf]
        %v1155 = vld [vmem:[#allocation13 + $0x38] sm:$0xf]
        %v1156 = vld [vmem:[#allocation13 + $0x3c] sm:$0xf]
        %v1157 = vld [vmem:[%s10] sm:$0x1]
        %v1159 = vperm.slane %v1157, 0
        %v1177 = vunpack.c.l.b16 %v1141
        %v1178 = vunpack.c.l.b16 %v1142
        %v1179 = vunpack.c.l.b16 %v1143
        %v1180 = vunpack.c.l.b16 %v1144
        %v1181 = vunpack.c.l.b16 %v1145
        %v1182 = vunpack.c.l.b16 %v1146
        %v1183 = vunpack.c.l.b16 %v1147
        %v1184 = vunpack.c.l.b16 %v1148
        %v1185 = vunpack.c.l.b16 %v1149
        %v1186 = vunpack.c.l.b16 %v1150
        %v1187 = vunpack.c.l.b16 %v1151
        %v1188 = vunpack.c.l.b16 %v1152
        %v1189 = vunpack.c.l.b16 %v1153
        %v1190 = vunpack.c.l.b16 %v1154
        %v1191 = vunpack.c.l.b16 %v1155
        %v1192 = vunpack.c.l.b16 %v1156
        %v1193 = vpack.c.b16 %v1178, %v1177
        %v1194 = vpack.c.b16 %v1180, %v1179
        %v1195 = vpack.c.b16 %v1182, %v1181
        %v1196 = vpack.c.b16 %v1184, %v1183
        %v1197 = vpack.c.b16 %v1186, %v1185
        %v1198 = vpack.c.b16 %v1188, %v1187
        %v1199 = vpack.c.b16 %v1190, %v1189
        %v1200 = vpack.c.b16 %v1192, %v1191
        %1209 = vmatpush.bf16.msra.mxu0 %v1200
        %1210 = vmatpush.bf16.msra.mxu0 %v1199
        %1211 = vmatpush.bf16.msra.mxu0 %v1198
        %1212 = vmatpush.bf16.msra.mxu0 %v1197
        %1213 = vmatpush.bf16.msra.mxu0 %v1196
        %1214 = vmatpush.bf16.msra.mxu0 %v1195
        %1215 = vmatpush.bf16.msra.mxu0 %v1194
        %1216 = vmatpush.bf16.msra.mxu0 %v1193
        %1217 = vmatmul.bf16.gmra.mxu0 %v1140
        %v1218 = vpop.f32.mrf.mxu0
        %v1219 = vadd.f32 %v1159, %v1218
        %v1220 = vpop.f32.mrf.mxu0
        %1221 = vdwg.mxu0
        %v1222 = vadd.f32 %v650, %v1219
        %v1223 = vld [vmem:[%s11] sm:$0x1]
        %v1224 = vld [vmem:[%s12] sm:$0x1]
        %1225 = vadd.xlane.f32.xlu0 %v1222
        %v1226 = vpop.xlane.xlu0 %1225
        %v1227 = vmul.f32 %v1226, %v624
        %v1228 = vsub.f32 %v1222, %v1227
        %v1229 = vmul.f32 %v1228, %v1228
        %1230 = vadd.xlane.f32.xlu0 %v1229
        %v1231 = vpop.xlane.xlu0 %1230
        %v1232 = vmul.f32 %v1231, %v624
        %v1233 = vadd.f32 %v1232, 1e-05
        %v1234 = vrsqrt.pop %v1233
        %v1235 = vmul.f32 %v1234, %v1233
        %v1236 = vmul.f32 %v1235, %v1234
        %v1237 = vmul.f32 0.5, %v1236
        %v1238 = vsub.f32 1.5, %v1237
        %v1239 = vmul.f32 %v1234, %v1238
        %vm1240 = vweird.f32 %v1233
        %vm1241 = vweird.f32 %v1234
        %vm1242 = vmor %vm1240, %vm1241
        %v1243 = vsel %vm1242, %v1234, %v1239
        %v1244 = vmul.f32 %v1228, %v1243
        %v1246 = vperm.slane %v1223, 0
        %v1248 = vmul.f32 %v1244, %v1246
        %v1250 = vperm.slane %v1224, 0
        %v1252 = vadd.f32 %v1248, %v1250
        %1253 = vst [vmem:[%s609] sm:$0xff] %v1252
        %s1254 = sand.u32 %s347, 1
        %s1255 = scalar_lea.sflag [#allocation4], %s1254
        %s1256 = sand.u32 %s347, 1
        %s1257 = smul.addr %s1256, 8
        %s1258 = scalar_lea.vmem [#allocation14], %s1257
        // Predicated region
        $region101: #{tpu_custom_call.1} parent=71 // pred_check
          %p1259 = pneg %p357
        $region102: #{tpu_custom_call.1} parent=71 // pred_check_branch
          %1261 = sbr.rel (%p1259) target = $region104
        $region103: #{tpu_custom_call.1} parent=71 // pred_region
          %1263 = vsyncadd %s1255, 0
          %s1264 = sadd.s32 %s40, %s39
          %s1265 = smul.addr %s1264, 8
          %s1266 = scalar_lea.hbm %s13, %s1265
          %s1268 = sshll.u32 %s1258, 4
          %s1269 = int_to_ptr.vmem [resolvable:$true] %s1268
          %s1270 = sshll.u32 %s1266, 4
          %s1271 = int_to_ptr.hbm [resolvable:$true] %s1270
          %1273 = dma.vmem_to_hbm [thread:$0]  %s1269, 128, %s1271, %s1255
        $region104: #{tpu_custom_call.1} parent=71 // pred_fallthru
          _
      $region72: #{tpu_custom_call.1} parent=5 // pred_fallthru
        _
      %p1274 = scmp.le.s32.totalorder 2, %s30
      // Predicated region
      $region105: #{tpu_custom_call.1} parent=5 // pred_check
        %p1275 = pneg %p1274
      $region106: #{tpu_custom_call.1} parent=5 // pred_check_branch
        %1277 = sbr.rel (%p1275) target = $region108
      $region107: #{tpu_custom_call.1} parent=5 // pred_region
        %s1278 = ssub.s32 %s30, 2
        // Predicated region
        $region109: #{tpu_custom_call.1} parent=107 // pred_check
          %p1279 = pneg %p363
        $region110: #{tpu_custom_call.1} parent=107 // pred_check_branch
          %1281 = sbr.rel (%p1279) target = $region112
        $region111: #{tpu_custom_call.1} parent=107 // pred_region
          %s1282 = sand.u32 %s348, 1
          %s1283 = scalar_lea.sflag [#allocation4], %s1282
          %s1284 = sand.u32 %s348, 1
          %s1285 = smul.addr %s1284, 8
          %s1286 = scalar_lea.vmem [#allocation14], %s1285
          %1288 = dma.done %s1283, 128
        $region112: #{tpu_custom_call.1} parent=107 // pred_fallthru
          _
      $region108: #{tpu_custom_call.1} parent=5 // pred_fallthru
        _
    $region6: #{tpu_custom_call.1} parent=1 // loop_footer
      %s34 = sadd.s32 1, %s30
    $region7: #{tpu_custom_call.1} parent=1 // loop_footer_branch
      %29 = sbr.rel target = $region3
    $region8: #{tpu_custom_call.1} parent=1 // loop_exit
      _
    %1289 = vsyncpa [#allocation3], 1
    %s1290 = scalar_lea.sflag [#allocation3], 1
    %1291 = vsyncpa %s1290, 1
    %1292 = vsyncpa [#allocation6], 1
    %s1293 = scalar_lea.sflag [#allocation6], 1
    %1294 = vsyncpa %s1293, 1
    %1295 = vsyncpa [#allocation9], 1
    %1296 = vsyncpa [#allocation12], 1
    %1297 = vsyncpa [#allocation4], 1
    %s1298 = scalar_lea.sflag [#allocation4], 1
    %1299 = vsyncpa %s1298, 1

</llo_original>
